<compile_context>
chip_gen: v7x
topology: tpu7x:2x2x1
jax: 0.10.0
libtpu: 0.0.40
codegen_flags: <defaults>
</compile_context>

<pallas_src>
import math

import jax
import jax.numpy as jnp
from jax.experimental import pallas as pl
from jax.experimental.pallas import tpu as pltpu

# ----- small, forward-consistent shapes -----
B, N, D = 2, 8, 64                  # batch, num_patches, embed dim
BN = B * N
NUM_HEADS = 4
HEAD_DIM = D // NUM_HEADS
MLP_RATIO = 4.0
HIDDEN = int(D * MLP_RATIO)
ATTN_SCALE = HEAD_DIM ** 0.5        # Attention.scale = head_dim ** 0.5
MLP_SCALE = math.sqrt(D)            # Mlp.scale = sqrt(in_features)
QKV_SEG = 128                       # lane-aligned segment width for fused QKV


def _cosine_norm_full(t):
    """cosine_norm over the full last axis: t / clamp(||t||, 1e-6)."""
    ss = jnp.sum(t * t, axis=-1, keepdims=True)
    return t * jax.lax.rsqrt(jnp.maximum(ss, 1e-12))


def block_kernel(x_ref, wqkv_ref, wo_ref, sqkq_ref, sqkk_ref,
                 wupgate_ref, wdown_ref, aA_ref, aM_ref,
                 headmask_ref, attnmask_ref, o_ref):
    x = x_ref[...]                                    # (BN, D) f32
    xb = x.astype(jnp.bfloat16)

    # ---------------- fused QKV projection (lane-aligned segments) ----------
    qkv = jnp.dot(xb, wqkv_ref[...],
                  preferred_element_type=jnp.float32)  # (BN, 3*128) f32
    q = qkv[:, 0:D]
    k = qkv[:, QKV_SEG:QKV_SEG + D]
    v = qkv[:, 2 * QKV_SEG:2 * QKV_SEG + D]

    # Per-head cosine norm: sum-of-squares via block-diagonal mask matmul (MXU).
    headmask = headmask_ref[...]                       # (D, D) bf16 0/1
    q_ss = jnp.dot((q * q).astype(jnp.bfloat16), headmask,
                   preferred_element_type=jnp.float32)
    k_ss = jnp.dot((k * k).astype(jnp.bfloat16), headmask,
                   preferred_element_type=jnp.float32)
    # ATTN_SCALE is pre-folded into sqkq.
    qn = (q * jax.lax.rsqrt(jnp.maximum(q_ss, 1e-12)) * sqkq_ref[...]
          ).astype(jnp.bfloat16)
    kn = (k * jax.lax.rsqrt(jnp.maximum(k_ss, 1e-12)) * sqkk_ref[...]
          ).astype(jnp.bfloat16)
    vb = v.astype(jnp.bfloat16)

    # ---------------- attention: per head, all batches at once --------------
    attn_mask = attnmask_ref[...]                      # (BN, BN) f32 {0, -1e30}
    head_outs = []
    for h in range(NUM_HEADS):
        c0 = h * HEAD_DIM
        qh = qn[:, c0:c0 + HEAD_DIM]                   # (BN, Dh) bf16
        kh = kn[:, c0:c0 + HEAD_DIM]
        vh = vb[:, c0:c0 + HEAD_DIM]
        # contract last axes of both operands (no explicit transpose)
        logits = jax.lax.dot_general(
            qh, kh, (((1,), (1,)), ((), ())),
            preferred_element_type=jnp.float32) + attn_mask
        logits = logits - jnp.max(logits, axis=-1, keepdims=True)
        p = jnp.exp(logits)
        p = p * pl.reciprocal(jnp.sum(p, axis=-1, keepdims=True), approx=True)
        head_outs.append(jnp.dot(p.astype(jnp.bfloat16), vh,
                                 preferred_element_type=jnp.float32))
    scores = jnp.concatenate(head_outs, axis=-1)       # (BN, D), in registers

    attn_out = jnp.dot(scores.astype(jnp.bfloat16), wo_ref[...],
                       preferred_element_type=jnp.float32)  # (BN, D)

    # ---------------- residual / hypersphere update (attention) -------------
    aA = aA_ref[...]                                   # (1, D) f32
    h_A = _cosine_norm_full(attn_out)
    h1 = _cosine_norm_full(x + aA * (h_A - x))

    # ---------------- gated-SiLU MLP (up/gate fused, scales folded) ---------
    ug = jnp.dot(h1.astype(jnp.bfloat16), wupgate_ref[...],
                 preferred_element_type=jnp.float32)   # (BN, 2*HIDDEN)
    u = ug[:, :HIDDEN]
    g = ug[:, HIDDEN:]
    hidden = u * (g * jax.nn.sigmoid(g))               # u * silu(g), f32
    mlp_out = jnp.dot(hidden.astype(jnp.bfloat16), wdown_ref[...],
                      preferred_element_type=jnp.float32)  # (BN, D)

    # ---------------- residual / hypersphere update (MLP) -------------------
    aM = aM_ref[...]
    h_M = _cosine_norm_full(mlp_out)
    h2 = _cosine_norm_full(h1 + aM * (h_M - h1))

    o_ref[...] = h2.astype(o_ref.dtype)


def prepare_kernel_weights(p):
    """One-time weight prep: fuse/pad QKV, fuse up/gate, fold scales, cast bf16."""
    zpad = jnp.zeros((D, QKV_SEG - D), jnp.float32)
    # Q in lanes 0..63, K in 128..191, V in 256..319 (zeros elsewhere).
    w_qkv = jnp.concatenate(
        [p["wq"], zpad, p["wk"], zpad, p["wv"], zpad], axis=1)        # (D, 384)
    w_upgate = jnp.concatenate(
        [p["wup"] * p["s_u"], p["wgate"] * (p["s_v"] * MLP_SCALE)],
        axis=1)                                                        # (D, 2H)

    # constants: block-diagonal head mask and cross-batch additive mask
    hid = jnp.arange(D) // HEAD_DIM
    head_mask = (hid[:, None] == hid[None, :]).astype(jnp.bfloat16)    # (D, D)
    bid = jnp.arange(BN) // N
    attn_mask = jnp.where(bid[:, None] == bid[None, :], 0.0,
                          -1e30).astype(jnp.float32)                   # (BN, BN)

    sqk = p["s_qk"].reshape(1, D)        # head-major, matches q/k lane layout
    return {
        "w_qkv": w_qkv.astype(jnp.bfloat16),
        "wo": p["wo"].astype(jnp.bfloat16),
        "s_qk_q": (sqk * ATTN_SCALE).astype(jnp.float32),
        "s_qk_k": sqk.astype(jnp.float32),
        "w_upgate": w_upgate.astype(jnp.bfloat16),
        "wdown": p["wdown"].astype(jnp.bfloat16),
        "alpha_A": p["alpha_A"].astype(jnp.float32),
        "alpha_M": p["alpha_M"].astype(jnp.float32),
        "head_mask": head_mask,
        "attn_mask": attn_mask,
    }


def block_forward(x, kw):
    """Single gridless pallas_call; batch*patches folded onto sublanes."""
    xf = x.reshape(BN, D)
    weight_order = ["w_qkv", "wo", "s_qk_q", "s_qk_k", "w_upgate", "wdown",
                    "alpha_A", "alpha_M", "head_mask", "attn_mask"]
    weights = [kw[k] for k in weight_order]

    vmem_spec = pl.BlockSpec(memory_space=pltpu.MemorySpace.VMEM)
    out = pl.pallas_call(
        block_kernel,
        out_shape=jax.ShapeDtypeStruct((BN, D), x.dtype),
        in_specs=[vmem_spec] * (1 + len(weights)),
        out_specs=vmem_spec,
    )(xf, *weights)
    return out.reshape(B, N, D)


# ---------------- deterministic parameter construction ----------------
def make_params(key):
    ks = jax.random.split(key, 12)

    def lin_t(k, out_features, in_features):
        # torch Linear weight is (out, in); store transposed (in, out).
        w = jax.random.normal(k, (out_features, in_features), jnp.float32) * 0.02
        return w.T

    # Scale module: param s = ones * scale (mildly perturbed, deterministic);
    # effective value = s * (init / scale).
    def scale_eff(k, shape, scale, init):
        s_param = (jnp.ones(shape, jnp.float32)
                   + 0.1 * jax.random.normal(k, shape, jnp.float32)) * scale
        return s_param * (init / scale)

    params = {
        "wq": lin_t(ks[0], D, D),
        "wk": lin_t(ks[1], D, D),
        "wv": lin_t(ks[2], D, D),
        "wo": lin_t(ks[3], D, D),
        "wup": lin_t(ks[4], HIDDEN, D),
        "wgate": lin_t(ks[5], HIDDEN, D),
        "wdown": lin_t(ks[6], D, HIDDEN),
        "s_qk": scale_eff(ks[7], (NUM_HEADS, HEAD_DIM), 1.0 / math.sqrt(D), 1.0),
        "s_u": scale_eff(ks[8], (1, HIDDEN), 1.0, 1.0),
        "s_v": scale_eff(ks[9], (1, HIDDEN), 1.0, 1.0),
        "alpha_A": scale_eff(ks[10], (1, D), 1.0 / math.sqrt(D), 0.05),
        "alpha_M": scale_eff(ks[11], (1, D), 1.0 / math.sqrt(D), 0.05),
    }
    return params


# ---------------- pure-JAX reference (mirrors the PyTorch forward) ----------------
def block_reference(x, p):
    def cn(t):
        n = jnp.maximum(jnp.sqrt(jnp.sum(t * t, axis=-1, keepdims=True)), 1e-6)
        return t / n

    # Attention
    q = (x @ p["wq"]).reshape(B, N, NUM_HEADS, HEAD_DIM)
    k = (x @ p["wk"]).reshape(B, N, NUM_HEADS, HEAD_DIM)
    v = (x @ p["wv"]).reshape(B, N, NUM_HEADS, HEAD_DIM)
    q = cn(q) * p["s_qk"]
    k = cn(k) * p["s_qk"]
    q, k, v = (t.transpose(0, 2, 1, 3) for t in (q, k, v))   # (B, H, N, Dh)
    logits = jnp.einsum("bhqd,bhkd->bhqk", q, k) * ATTN_SCALE
    attn = jax.nn.softmax(logits, axis=-1)
    scores = jnp.einsum("bhqk,bhkd->bhqd", attn, v)
    scores = scores.transpose(0, 2, 1, 3).reshape(B, N, D)
    attn_out = scores @ p["wo"]

    h_A = cn(attn_out)
    h1 = cn(x + p["alpha_A"] * (h_A - x))

    # MLP
    u = (h1 @ p["wup"]) * p["s_u"]
    g = (h1 @ p["wgate"]) * p["s_v"] * MLP_SCALE
    hidden = u * jax.nn.silu(g)
    mlp_out = hidden @ p["wdown"]

    h_M = cn(mlp_out)
    h2 = cn(h1 + p["alpha_M"] * (h_M - h1))
    return h2


if __name__ == "__main__":
    key = jax.random.PRNGKey(0)
    kx, kp = jax.random.split(key)
    x = jax.random.normal(kx, (B, N, D), jnp.float32)
    params = make_params(kp)
    kernel_weights = prepare_kernel_weights(params)   # one-time fusion / folding

    out = block_forward(x, kernel_weights)
    out = jax.block_until_ready(out)

    ref = block_reference(x, params)
    assert out.shape == (B, N, D)
    # 2e-2 tolerance: bf16 MXU operands + approximate softmax reciprocal vs.
    # the unfused f32 reference.
    assert jnp.allclose(out, ref, atol=2e-2, rtol=2e-2), (
        f"max abs err {jnp.max(jnp.abs(out - ref))}")

    print("KERNEL_OK")
</pallas_src>

<mosaic_0001>
module attributes {stable_mosaic.version = 11 : i64} {
  func.func @block_kernel(%arg0: memref<16x64xf32, #tpu.memory_space<vmem>>, %arg1: memref<64x384xbf16, #tpu.memory_space<vmem>>, %arg2: memref<64x64xbf16, #tpu.memory_space<vmem>>, %arg3: memref<1x64xf32, #tpu.memory_space<vmem>>, %arg4: memref<1x64xf32, #tpu.memory_space<vmem>>, %arg5: memref<64x512xbf16, #tpu.memory_space<vmem>>, %arg6: memref<256x64xbf16, #tpu.memory_space<vmem>>, %arg7: memref<1x64xf32, #tpu.memory_space<vmem>>, %arg8: memref<1x64xf32, #tpu.memory_space<vmem>>, %arg9: memref<64x64xbf16, #tpu.memory_space<vmem>>, %arg10: memref<16x16xf32, #tpu.memory_space<vmem>>, %arg11: memref<16x64xf32, #tpu.memory_space<vmem>>) attributes {dimension_semantics = [], scalar_prefetch = 0 : i64, scratch_operands = 0 : i64, tpu.core_type = #tpu.core_type<tc>} {
    %c0 = arith.constant 0 : index
    %c0_0 = arith.constant 0 : index
    %0 = vector.load %arg0[%c0, %c0_0] : memref<16x64xf32, #tpu.memory_space<vmem>>, vector<16x64xf32>
    %1 = arith.truncf %0 : vector<16x64xf32> to vector<16x64xbf16>
    %c0_1 = arith.constant 0 : index
    %c0_2 = arith.constant 0 : index
    %2 = vector.load %arg1[%c0_1, %c0_2] : memref<64x384xbf16, #tpu.memory_space<vmem>>, vector<64x384xbf16>
    %cst = arith.constant dense<0.000000e+00> : vector<16x384xf32>
    %3 = tpu.matmul %1, %2, %cst {dimension_numbers = #tpu.dot_dimension_numbers<[1], [0], [0], [1], [0, 0, 1, 1], [], []>} : vector<16x64xbf16>, vector<64x384xbf16>, vector<16x384xf32> -> vector<16x384xf32>
    %4 = vector.extract_strided_slice %3 {offsets = [0, 0], sizes = [16, 64], strides = [1, 1]} : vector<16x384xf32> to vector<16x64xf32>
    %5 = vector.extract_strided_slice %3 {offsets = [0, 128], sizes = [16, 64], strides = [1, 1]} : vector<16x384xf32> to vector<16x64xf32>
    %6 = vector.extract_strided_slice %3 {offsets = [0, 256], sizes = [16, 64], strides = [1, 1]} : vector<16x384xf32> to vector<16x64xf32>
    %c0_3 = arith.constant 0 : index
    %c0_4 = arith.constant 0 : index
    %7 = vector.load %arg9[%c0_3, %c0_4] : memref<64x64xbf16, #tpu.memory_space<vmem>>, vector<64x64xbf16>
    %8 = arith.mulf %4, %4 : vector<16x64xf32>
    %9 = arith.truncf %8 : vector<16x64xf32> to vector<16x64xbf16>
    %cst_5 = arith.constant dense<0.000000e+00> : vector<16x64xf32>
    %10 = tpu.matmul %9, %7, %cst_5 {dimension_numbers = #tpu.dot_dimension_numbers<[1], [0], [0], [1], [0, 0, 1, 1], [], []>} : vector<16x64xbf16>, vector<64x64xbf16>, vector<16x64xf32> -> vector<16x64xf32>
    %11 = arith.mulf %5, %5 : vector<16x64xf32>
    %12 = arith.truncf %11 : vector<16x64xf32> to vector<16x64xbf16>
    %cst_6 = arith.constant dense<0.000000e+00> : vector<16x64xf32>
    %13 = tpu.matmul %12, %7, %cst_6 {dimension_numbers = #tpu.dot_dimension_numbers<[1], [0], [0], [1], [0, 0, 1, 1], [], []>} : vector<16x64xbf16>, vector<64x64xbf16>, vector<16x64xf32> -> vector<16x64xf32>
    %cst_7 = arith.constant 9.99999996E-13 : f32
    %14 = vector.broadcast %cst_7 : f32 to vector<16x64xf32>
    %15 = arith.maximumf %10, %14 : vector<16x64xf32>
    %16 = math.rsqrt %15 : vector<16x64xf32>
    %17 = arith.mulf %4, %16 : vector<16x64xf32>
    %c0_8 = arith.constant 0 : index
    %c0_9 = arith.constant 0 : index
    %18 = vector.load %arg3[%c0_8, %c0_9] : memref<1x64xf32, #tpu.memory_space<vmem>>, vector<1x64xf32>
    %19 = vector.broadcast %18 : vector<1x64xf32> to vector<16x64xf32>
    %20 = arith.mulf %17, %19 : vector<16x64xf32>
    %21 = arith.truncf %20 : vector<16x64xf32> to vector<16x64xbf16>
    %cst_10 = arith.constant 9.99999996E-13 : f32
    %22 = vector.broadcast %cst_10 : f32 to vector<16x64xf32>
    %23 = arith.maximumf %13, %22 : vector<16x64xf32>
    %24 = math.rsqrt %23 : vector<16x64xf32>
    %25 = arith.mulf %5, %24 : vector<16x64xf32>
    %c0_11 = arith.constant 0 : index
    %c0_12 = arith.constant 0 : index
    %26 = vector.load %arg4[%c0_11, %c0_12] : memref<1x64xf32, #tpu.memory_space<vmem>>, vector<1x64xf32>
    %27 = vector.broadcast %26 : vector<1x64xf32> to vector<16x64xf32>
    %28 = arith.mulf %25, %27 : vector<16x64xf32>
    %29 = arith.truncf %28 : vector<16x64xf32> to vector<16x64xbf16>
    %30 = arith.truncf %6 : vector<16x64xf32> to vector<16x64xbf16>
    %c0_13 = arith.constant 0 : index
    %c0_14 = arith.constant 0 : index
    %31 = vector.load %arg10[%c0_13, %c0_14] : memref<16x16xf32, #tpu.memory_space<vmem>>, vector<16x16xf32>
    %32 = vector.extract_strided_slice %21 {offsets = [0, 0], sizes = [16, 16], strides = [1, 1]} : vector<16x64xbf16> to vector<16x16xbf16>
    %33 = vector.extract_strided_slice %29 {offsets = [0, 0], sizes = [16, 16], strides = [1, 1]} : vector<16x64xbf16> to vector<16x16xbf16>
    %34 = vector.extract_strided_slice %30 {offsets = [0, 0], sizes = [16, 16], strides = [1, 1]} : vector<16x64xbf16> to vector<16x16xbf16>
    %cst_15 = arith.constant dense<0.000000e+00> : vector<16x16xf32>
    %35 = tpu.matmul %32, %33, %cst_15 {dimension_numbers = #tpu.dot_dimension_numbers<[1], [1], [0], [0], [0, 0, 1, 0], [], []>} : vector<16x16xbf16>, vector<16x16xbf16>, vector<16x16xf32> -> vector<16x16xf32>
    %36 = arith.addf %35, %31 : vector<16x16xf32>
    %cst_16 = arith.constant dense<0xFF800000> : vector<16xf32>
    %37 = vector.multi_reduction <maximumf>, %36, %cst_16 [1] : vector<16x16xf32> to vector<16xf32>
    %38 = vector.shape_cast %37 : vector<16xf32> to vector<16x1xf32>
    %39 = vector.broadcast %38 : vector<16x1xf32> to vector<16x16xf32>
    %40 = arith.subf %36, %39 : vector<16x16xf32>
    %41 = math.exp %40 : vector<16x16xf32>
    %cst_17 = arith.constant dense<0.000000e+00> : vector<16xf32>
    %42 = vector.multi_reduction <add>, %41, %cst_17 [1] : vector<16x16xf32> to vector<16xf32>
    %43 = vector.shape_cast %42 : vector<16xf32> to vector<16x1xf32>
    %44 = tpu.reciprocal %43 {approx = true} : vector<16x1xf32> -> vector<16x1xf32>
    %45 = vector.broadcast %44 : vector<16x1xf32> to vector<16x16xf32>
    %46 = arith.mulf %41, %45 : vector<16x16xf32>
    %47 = arith.truncf %46 : vector<16x16xf32> to vector<16x16xbf16>
    %cst_18 = arith.constant dense<0.000000e+00> : vector<16x16xf32>
    %48 = tpu.matmul %47, %34, %cst_18 {dimension_numbers = #tpu.dot_dimension_numbers<[1], [0], [0], [1], [0, 0, 1, 1], [], []>} : vector<16x16xbf16>, vector<16x16xbf16>, vector<16x16xf32> -> vector<16x16xf32>
    %49 = vector.extract_strided_slice %21 {offsets = [0, 16], sizes = [16, 16], strides = [1, 1]} : vector<16x64xbf16> to vector<16x16xbf16>
    %50 = vector.extract_strided_slice %29 {offsets = [0, 16], sizes = [16, 16], strides = [1, 1]} : vector<16x64xbf16> to vector<16x16xbf16>
    %51 = vector.extract_strided_slice %30 {offsets = [0, 16], sizes = [16, 16], strides = [1, 1]} : vector<16x64xbf16> to vector<16x16xbf16>
    %cst_19 = arith.constant dense<0.000000e+00> : vector<16x16xf32>
    %52 = tpu.matmul %49, %50, %cst_19 {dimension_numbers = #tpu.dot_dimension_numbers<[1], [1], [0], [0], [0, 0, 1, 0], [], []>} : vector<16x16xbf16>, vector<16x16xbf16>, vector<16x16xf32> -> vector<16x16xf32>
    %53 = arith.addf %52, %31 : vector<16x16xf32>
    %cst_20 = arith.constant dense<0xFF800000> : vector<16xf32>
    %54 = vector.multi_reduction <maximumf>, %53, %cst_20 [1] : vector<16x16xf32> to vector<16xf32>
    %55 = vector.shape_cast %54 : vector<16xf32> to vector<16x1xf32>
    %56 = vector.broadcast %55 : vector<16x1xf32> to vector<16x16xf32>
    %57 = arith.subf %53, %56 : vector<16x16xf32>
    %58 = math.exp %57 : vector<16x16xf32>
    %cst_21 = arith.constant dense<0.000000e+00> : vector<16xf32>
    %59 = vector.multi_reduction <add>, %58, %cst_21 [1] : vector<16x16xf32> to vector<16xf32>
    %60 = vector.shape_cast %59 : vector<16xf32> to vector<16x1xf32>
    %61 = tpu.reciprocal %60 {approx = true} : vector<16x1xf32> -> vector<16x1xf32>
    %62 = vector.broadcast %61 : vector<16x1xf32> to vector<16x16xf32>
    %63 = arith.mulf %58, %62 : vector<16x16xf32>
    %64 = arith.truncf %63 : vector<16x16xf32> to vector<16x16xbf16>
    %cst_22 = arith.constant dense<0.000000e+00> : vector<16x16xf32>
    %65 = tpu.matmul %64, %51, %cst_22 {dimension_numbers = #tpu.dot_dimension_numbers<[1], [0], [0], [1], [0, 0, 1, 1], [], []>} : vector<16x16xbf16>, vector<16x16xbf16>, vector<16x16xf32> -> vector<16x16xf32>
    %66 = vector.extract_strided_slice %21 {offsets = [0, 32], sizes = [16, 16], strides = [1, 1]} : vector<16x64xbf16> to vector<16x16xbf16>
    %67 = vector.extract_strided_slice %29 {offsets = [0, 32], sizes = [16, 16], strides = [1, 1]} : vector<16x64xbf16> to vector<16x16xbf16>
    %68 = vector.extract_strided_slice %30 {offsets = [0, 32], sizes = [16, 16], strides = [1, 1]} : vector<16x64xbf16> to vector<16x16xbf16>
    %cst_23 = arith.constant dense<0.000000e+00> : vector<16x16xf32>
    %69 = tpu.matmul %66, %67, %cst_23 {dimension_numbers = #tpu.dot_dimension_numbers<[1], [1], [0], [0], [0, 0, 1, 0], [], []>} : vector<16x16xbf16>, vector<16x16xbf16>, vector<16x16xf32> -> vector<16x16xf32>
    %70 = arith.addf %69, %31 : vector<16x16xf32>
    %cst_24 = arith.constant dense<0xFF800000> : vector<16xf32>
    %71 = vector.multi_reduction <maximumf>, %70, %cst_24 [1] : vector<16x16xf32> to vector<16xf32>
    %72 = vector.shape_cast %71 : vector<16xf32> to vector<16x1xf32>
    %73 = vector.broadcast %72 : vector<16x1xf32> to vector<16x16xf32>
    %74 = arith.subf %70, %73 : vector<16x16xf32>
    %75 = math.exp %74 : vector<16x16xf32>
    %cst_25 = arith.constant dense<0.000000e+00> : vector<16xf32>
    %76 = vector.multi_reduction <add>, %75, %cst_25 [1] : vector<16x16xf32> to vector<16xf32>
    %77 = vector.shape_cast %76 : vector<16xf32> to vector<16x1xf32>
    %78 = tpu.reciprocal %77 {approx = true} : vector<16x1xf32> -> vector<16x1xf32>
    %79 = vector.broadcast %78 : vector<16x1xf32> to vector<16x16xf32>
    %80 = arith.mulf %75, %79 : vector<16x16xf32>
    %81 = arith.truncf %80 : vector<16x16xf32> to vector<16x16xbf16>
    %cst_26 = arith.constant dense<0.000000e+00> : vector<16x16xf32>
    %82 = tpu.matmul %81, %68, %cst_26 {dimension_numbers = #tpu.dot_dimension_numbers<[1], [0], [0], [1], [0, 0, 1, 1], [], []>} : vector<16x16xbf16>, vector<16x16xbf16>, vector<16x16xf32> -> vector<16x16xf32>
    %83 = vector.extract_strided_slice %21 {offsets = [0, 48], sizes = [16, 16], strides = [1, 1]} : vector<16x64xbf16> to vector<16x16xbf16>
    %84 = vector.extract_strided_slice %29 {offsets = [0, 48], sizes = [16, 16], strides = [1, 1]} : vector<16x64xbf16> to vector<16x16xbf16>
    %85 = vector.extract_strided_slice %30 {offsets = [0, 48], sizes = [16, 16], strides = [1, 1]} : vector<16x64xbf16> to vector<16x16xbf16>
    %cst_27 = arith.constant dense<0.000000e+00> : vector<16x16xf32>
    %86 = tpu.matmul %83, %84, %cst_27 {dimension_numbers = #tpu.dot_dimension_numbers<[1], [1], [0], [0], [0, 0, 1, 0], [], []>} : vector<16x16xbf16>, vector<16x16xbf16>, vector<16x16xf32> -> vector<16x16xf32>
    %87 = arith.addf %86, %31 : vector<16x16xf32>
    %cst_28 = arith.constant dense<0xFF800000> : vector<16xf32>
    %88 = vector.multi_reduction <maximumf>, %87, %cst_28 [1] : vector<16x16xf32> to vector<16xf32>
    %89 = vector.shape_cast %88 : vector<16xf32> to vector<16x1xf32>
    %90 = vector.broadcast %89 : vector<16x1xf32> to vector<16x16xf32>
    %91 = arith.subf %87, %90 : vector<16x16xf32>
    %92 = math.exp %91 : vector<16x16xf32>
    %cst_29 = arith.constant dense<0.000000e+00> : vector<16xf32>
    %93 = vector.multi_reduction <add>, %92, %cst_29 [1] : vector<16x16xf32> to vector<16xf32>
    %94 = vector.shape_cast %93 : vector<16xf32> to vector<16x1xf32>
    %95 = tpu.reciprocal %94 {approx = true} : vector<16x1xf32> -> vector<16x1xf32>
    %96 = vector.broadcast %95 : vector<16x1xf32> to vector<16x16xf32>
    %97 = arith.mulf %92, %96 : vector<16x16xf32>
    %98 = arith.truncf %97 : vector<16x16xf32> to vector<16x16xbf16>
    %cst_30 = arith.constant dense<0.000000e+00> : vector<16x16xf32>
    %99 = tpu.matmul %98, %85, %cst_30 {dimension_numbers = #tpu.dot_dimension_numbers<[1], [0], [0], [1], [0, 0, 1, 1], [], []>} : vector<16x16xbf16>, vector<16x16xbf16>, vector<16x16xf32> -> vector<16x16xf32>
    %100 = tpu.concatenate %48, %65, %82, %99 in 1 : vector<16x16xf32>, vector<16x16xf32>, vector<16x16xf32>, vector<16x16xf32> -> vector<16x64xf32>
    %101 = arith.truncf %100 : vector<16x64xf32> to vector<16x64xbf16>
    %c0_31 = arith.constant 0 : index
    %c0_32 = arith.constant 0 : index
    %102 = vector.load %arg2[%c0_31, %c0_32] : memref<64x64xbf16, #tpu.memory_space<vmem>>, vector<64x64xbf16>
    %cst_33 = arith.constant dense<0.000000e+00> : vector<16x64xf32>
    %103 = tpu.matmul %101, %102, %cst_33 {dimension_numbers = #tpu.dot_dimension_numbers<[1], [0], [0], [1], [0, 0, 1, 1], [], []>} : vector<16x64xbf16>, vector<64x64xbf16>, vector<16x64xf32> -> vector<16x64xf32>
    %c0_34 = arith.constant 0 : index
    %c0_35 = arith.constant 0 : index
    %104 = vector.load %arg7[%c0_34, %c0_35] : memref<1x64xf32, #tpu.memory_space<vmem>>, vector<1x64xf32>
    %105 = arith.mulf %103, %103 : vector<16x64xf32>
    %cst_36 = arith.constant dense<0.000000e+00> : vector<16xf32>
    %106 = vector.multi_reduction <add>, %105, %cst_36 [1] : vector<16x64xf32> to vector<16xf32>
    %107 = vector.shape_cast %106 : vector<16xf32> to vector<16x1xf32>
    %cst_37 = arith.constant 9.99999996E-13 : f32
    %108 = vector.broadcast %cst_37 : f32 to vector<16x1xf32>
    %109 = arith.maximumf %107, %108 : vector<16x1xf32>
    %110 = math.rsqrt %109 : vector<16x1xf32>
    %111 = vector.broadcast %110 : vector<16x1xf32> to vector<16x64xf32>
    %112 = arith.mulf %103, %111 : vector<16x64xf32>
    %113 = arith.subf %112, %0 : vector<16x64xf32>
    %114 = vector.broadcast %104 : vector<1x64xf32> to vector<16x64xf32>
    %115 = arith.mulf %114, %113 : vector<16x64xf32>
    %116 = arith.addf %0, %115 : vector<16x64xf32>
    %117 = arith.mulf %116, %116 : vector<16x64xf32>
    %cst_38 = arith.constant dense<0.000000e+00> : vector<16xf32>
    %118 = vector.multi_reduction <add>, %117, %cst_38 [1] : vector<16x64xf32> to vector<16xf32>
    %119 = vector.shape_cast %118 : vector<16xf32> to vector<16x1xf32>
    %cst_39 = arith.constant 9.99999996E-13 : f32
    %120 = vector.broadcast %cst_39 : f32 to vector<16x1xf32>
    %121 = arith.maximumf %119, %120 : vector<16x1xf32>
    %122 = math.rsqrt %121 : vector<16x1xf32>
    %123 = vector.broadcast %122 : vector<16x1xf32> to vector<16x64xf32>
    %124 = arith.mulf %116, %123 : vector<16x64xf32>
    %125 = arith.truncf %124 : vector<16x64xf32> to vector<16x64xbf16>
    %c0_40 = arith.constant 0 : index
    %c0_41 = arith.constant 0 : index
    %126 = vector.load %arg5[%c0_40, %c0_41] : memref<64x512xbf16, #tpu.memory_space<vmem>>, vector<64x512xbf16>
    %cst_42 = arith.constant dense<0.000000e+00> : vector<16x512xf32>
    %127 = tpu.matmul %125, %126, %cst_42 {dimension_numbers = #tpu.dot_dimension_numbers<[1], [0], [0], [1], [0, 0, 1, 1], [], []>} : vector<16x64xbf16>, vector<64x512xbf16>, vector<16x512xf32> -> vector<16x512xf32>
    %128 = vector.extract_strided_slice %127 {offsets = [0, 0], sizes = [16, 256], strides = [1, 1]} : vector<16x512xf32> to vector<16x256xf32>
    %129 = vector.extract_strided_slice %127 {offsets = [0, 256], sizes = [16, 256], strides = [1, 1]} : vector<16x512xf32> to vector<16x256xf32>
    %130 = arith.negf %129 : vector<16x256xf32>
    %131 = math.exp %130 : vector<16x256xf32>
    %cst_43 = arith.constant 1.000000e+00 : f32
    %132 = vector.broadcast %cst_43 : f32 to vector<16x256xf32>
    %133 = arith.addf %132, %131 : vector<16x256xf32>
    %134 = arith.divf %132, %133 : vector<16x256xf32>
    %135 = arith.mulf %129, %134 : vector<16x256xf32>
    %136 = arith.mulf %128, %135 : vector<16x256xf32>
    %137 = arith.truncf %136 : vector<16x256xf32> to vector<16x256xbf16>
    %c0_44 = arith.constant 0 : index
    %c0_45 = arith.constant 0 : index
    %138 = vector.load %arg6[%c0_44, %c0_45] : memref<256x64xbf16, #tpu.memory_space<vmem>>, vector<256x64xbf16>
    %cst_46 = arith.constant dense<0.000000e+00> : vector<16x64xf32>
    %139 = tpu.matmul %137, %138, %cst_46 {dimension_numbers = #tpu.dot_dimension_numbers<[1], [0], [0], [1], [0, 0, 1, 1], [], []>} : vector<16x256xbf16>, vector<256x64xbf16>, vector<16x64xf32> -> vector<16x64xf32>
    %c0_47 = arith.constant 0 : index
    %c0_48 = arith.constant 0 : index
    %140 = vector.load %arg8[%c0_47, %c0_48] : memref<1x64xf32, #tpu.memory_space<vmem>>, vector<1x64xf32>
    %141 = arith.mulf %139, %139 : vector<16x64xf32>
    %cst_49 = arith.constant dense<0.000000e+00> : vector<16xf32>
    %142 = vector.multi_reduction <add>, %141, %cst_49 [1] : vector<16x64xf32> to vector<16xf32>
    %143 = vector.shape_cast %142 : vector<16xf32> to vector<16x1xf32>
    %cst_50 = arith.constant 9.99999996E-13 : f32
    %144 = vector.broadcast %cst_50 : f32 to vector<16x1xf32>
    %145 = arith.maximumf %143, %144 : vector<16x1xf32>
    %146 = math.rsqrt %145 : vector<16x1xf32>
    %147 = vector.broadcast %146 : vector<16x1xf32> to vector<16x64xf32>
    %148 = arith.mulf %139, %147 : vector<16x64xf32>
    %149 = arith.subf %148, %124 : vector<16x64xf32>
    %150 = vector.broadcast %140 : vector<1x64xf32> to vector<16x64xf32>
    %151 = arith.mulf %150, %149 : vector<16x64xf32>
    %152 = arith.addf %124, %151 : vector<16x64xf32>
    %153 = arith.mulf %152, %152 : vector<16x64xf32>
    %cst_51 = arith.constant dense<0.000000e+00> : vector<16xf32>
    %154 = vector.multi_reduction <add>, %153, %cst_51 [1] : vector<16x64xf32> to vector<16xf32>
    %155 = vector.shape_cast %154 : vector<16xf32> to vector<16x1xf32>
    %cst_52 = arith.constant 9.99999996E-13 : f32
    %156 = vector.broadcast %cst_52 : f32 to vector<16x1xf32>
    %157 = arith.maximumf %155, %156 : vector<16x1xf32>
    %158 = math.rsqrt %157 : vector<16x1xf32>
    %159 = vector.broadcast %158 : vector<16x1xf32> to vector<16x64xf32>
    %160 = arith.mulf %152, %159 : vector<16x64xf32>
    %c0_53 = arith.constant 0 : index
    %c0_54 = arith.constant 0 : index
    %161 = vector.load %arg11[%c0_53, %c0_54] : memref<16x64xf32, #tpu.memory_space<vmem>>, vector<16x64xf32>
    tpu.vector_store %arg11[%c0_53, %c0_54], %160 {strides = array<i32>} : memref<16x64xf32, #tpu.memory_space<vmem>>, vector<16x64xf32>,
    return
  }
}

</mosaic_0001>

<llo_original>
// kernel: tpu_custom_call.1
$region0: #{tpu_custom_call.1}
  #allocation0 [shape = 'u32[]', space=smem, size = 0x4, offset = 0x4, fixed_abs, tag = 'smem constant byte address 0x4 - core index']
  #allocation1 [shape = 'u32[144,128]{1,0:T(1,128)}', space=vmem, size = 0x12000, scoped, tag = 'internal scratch']
  %s0 = inlined_call_operand.vmem [shape: f32[16,64], index: 0, kind: input, shape index: {}]
  %s1 = inlined_call_operand.hbm [shape: bf16[64,384], index: 1, kind: input, shape index: {}]
  %s2 = inlined_call_operand.vmem [shape: bf16[64,64], index: 2, kind: input, shape index: {}]
  %s3 = inlined_call_operand.vmem [shape: f32[1,64], index: 3, kind: input, shape index: {}]
  %s4 = inlined_call_operand.vmem [shape: f32[1,64], index: 4, kind: input, shape index: {}]
  %s5 = inlined_call_operand.vmem [shape: bf16[64,512], index: 5, kind: input, shape index: {}]
  %s6 = inlined_call_operand.vmem [shape: bf16[256,64], index: 6, kind: input, shape index: {}]
  %s7 = inlined_call_operand.hbm [shape: f32[1,64], index: 7, kind: input, shape index: {}]
  %s8 = inlined_call_operand.hbm [shape: f32[1,64], index: 8, kind: input, shape index: {}]
  %s9 = inlined_call_operand.vmem [shape: bf16[64,64], index: 9, kind: input, shape index: {}]
  %s10 = inlined_call_operand.vmem [shape: f32[16,16], index: 10, kind: input, shape index: {}]
  %s11 = inlined_call_operand.hbm [shape: f32[16,64], index: 11, kind: output, shape index: {}]
  %s12 = sld [smem:[#allocation0]]
  $region66: #{tpu_custom_call.1} parent=0
    _
  %s14 = ssub.s32 1, %s12
  %s15 = scalar_select 0, %s14, %s12
  $region1: #{tpu_custom_call.1} parent=0
    #allocation2 [shape = 'u8[49152]{0}', space=vmem, size = 0xc000, scoped, tag = 'input window, operand 1, single buffered']
    #allocation3 [shape = 's32[1]{0}', space=sflag, size = 0x4, scoped, tag = 'scoped memory for tpu_custom_call.1']
    #allocation4 [shape = 's32[1]{0}', space=sflag, size = 0x4, scoped, tag = 'scoped memory for tpu_custom_call.1']
    #allocation5 [shape = 'u8[512]{0}', space=vmem, size = 0x400, scoped, tag = 'input window, operand 7, single buffered']
    #allocation6 [shape = 's32[1]{0}', space=sflag, size = 0x4, scoped, tag = 'scoped memory for tpu_custom_call.1']
    #allocation7 [shape = 'u8[512]{0}', space=vmem, size = 0x400, scoped, tag = 'input window, operand 8, single buffered']
    #allocation8 [shape = 'u8[8192]{0}', space=vmem, size = 0x2000, scoped, tag = 'output window, operand 0, single buffered']
    %16 = vsyncpa [#allocation3], 0
    %17 = vsyncpa [#allocation6], 0
    %18 = vsyncpa [#allocation4], 0
    // Predicated region
    $region2: #{tpu_custom_call.1} parent=1 // pred_check
      _
    $region3: #{tpu_custom_call.1} parent=1 // pred_check_branch
      %20 = sbr.rel (0) target = $region5
    $region4: #{tpu_custom_call.1} parent=1 // pred_region
      _
    $region5: #{tpu_custom_call.1} parent=1 // pred_fallthru
      _
    // Predicated region
    $region6: #{tpu_custom_call.1} parent=1 // pred_check
      _
    $region7: #{tpu_custom_call.1} parent=1 // pred_check_branch
      %22 = sbr.rel (0) target = $region9
    $region8: #{tpu_custom_call.1} parent=1 // pred_region
      %s24 = ssub.s32 1536, 1536
      %25 = vsyncadd [#allocation3], %s24
      %s26 = sshll.u32 [#allocation2], 4
      %s27 = int_to_ptr.vmem [resolvable:$true] %s26
      %32 = dma.hbm_to_vmem [thread:$0]  %s1, 1536, %s27, [#allocation3], 192, 192, 12
    $region9: #{tpu_custom_call.1} parent=1 // pred_fallthru
      _
    // Predicated region
    $region10: #{tpu_custom_call.1} parent=1 // pred_check
      _
    $region11: #{tpu_custom_call.1} parent=1 // pred_check_branch
      %34 = sbr.rel (0) target = $region13
    $region12: #{tpu_custom_call.1} parent=1 // pred_region
      _
    $region13: #{tpu_custom_call.1} parent=1 // pred_fallthru
      _
    // Predicated region
    $region14: #{tpu_custom_call.1} parent=1 // pred_check
      _
    $region15: #{tpu_custom_call.1} parent=1 // pred_check_branch
      %36 = sbr.rel (0) target = $region17
    $region16: #{tpu_custom_call.1} parent=1 // pred_region
      _
    $region17: #{tpu_custom_call.1} parent=1 // pred_fallthru
      _
    // Predicated region
    $region18: #{tpu_custom_call.1} parent=1 // pred_check
      _
    $region19: #{tpu_custom_call.1} parent=1 // pred_check_branch
      %38 = sbr.rel (0) target = $region21
    $region20: #{tpu_custom_call.1} parent=1 // pred_region
      _
    $region21: #{tpu_custom_call.1} parent=1 // pred_fallthru
      _
    // Predicated region
    $region22: #{tpu_custom_call.1} parent=1 // pred_check
      _
    $region23: #{tpu_custom_call.1} parent=1 // pred_check_branch
      %40 = sbr.rel (0) target = $region25
    $region24: #{tpu_custom_call.1} parent=1 // pred_region
      _
    $region25: #{tpu_custom_call.1} parent=1 // pred_fallthru
      _
    // Predicated region
    $region26: #{tpu_custom_call.1} parent=1 // pred_check
      _
    $region27: #{tpu_custom_call.1} parent=1 // pred_check_branch
      %42 = sbr.rel (0) target = $region29
    $region28: #{tpu_custom_call.1} parent=1 // pred_region
      _
    $region29: #{tpu_custom_call.1} parent=1 // pred_fallthru
      _
    // Predicated region
    $region30: #{tpu_custom_call.1} parent=1 // pred_check
      _
    $region31: #{tpu_custom_call.1} parent=1 // pred_check_branch
      %44 = sbr.rel (0) target = $region33
    $region32: #{tpu_custom_call.1} parent=1 // pred_region
      %s46 = ssub.s32 16, 16
      %47 = vsyncadd [#allocation6], %s46
      %s49 = sshll.u32 [#allocation5], 4
      %s50 = int_to_ptr.vmem [resolvable:$true] %s49
      %52 = dma.hbm_to_vmem [thread:$0]  %s7, 16, %s50, [#allocation6]
    $region33: #{tpu_custom_call.1} parent=1 // pred_fallthru
      _
    // Predicated region
    $region34: #{tpu_custom_call.1} parent=1 // pred_check
      _
    $region35: #{tpu_custom_call.1} parent=1 // pred_check_branch
      %54 = sbr.rel (0) target = $region37
    $region36: #{tpu_custom_call.1} parent=1 // pred_region
      %s56 = ssub.s32 16, 16
      %57 = vsyncadd [#allocation6], %s56
      %s59 = sshll.u32 [#allocation7], 4
      %s60 = int_to_ptr.vmem [resolvable:$true] %s59
      %62 = dma.hbm_to_vmem [thread:$0]  %s8, 16, %s60, [#allocation6]
    $region37: #{tpu_custom_call.1} parent=1 // pred_fallthru
      _
    // Predicated region
    $region38: #{tpu_custom_call.1} parent=1 // pred_check
      _
    $region39: #{tpu_custom_call.1} parent=1 // pred_check_branch
      %64 = sbr.rel (0) target = $region41
    $region40: #{tpu_custom_call.1} parent=1 // pred_region
      _
    $region41: #{tpu_custom_call.1} parent=1 // pred_fallthru
      _
    // Predicated region
    $region42: #{tpu_custom_call.1} parent=1 // pred_check
      _
    $region43: #{tpu_custom_call.1} parent=1 // pred_check_branch
      %66 = sbr.rel (0) target = $region45
    $region44: #{tpu_custom_call.1} parent=1 // pred_region
      _
    $region45: #{tpu_custom_call.1} parent=1 // pred_fallthru
      _
    // Predicated region
    $region46: #{tpu_custom_call.1} parent=1 // pred_check
      _
    $region47: #{tpu_custom_call.1} parent=1 // pred_check_branch
      %68 = sbr.rel (0) target = $region49
    $region48: #{tpu_custom_call.1} parent=1 // pred_region
      %69 = dma.done [#allocation3], 1536
    $region49: #{tpu_custom_call.1} parent=1 // pred_fallthru
      _
    // Predicated region
    $region50: #{tpu_custom_call.1} parent=1 // pred_check
      _
    $region51: #{tpu_custom_call.1} parent=1 // pred_check_branch
      %71 = sbr.rel (0) target = $region53
    $region52: #{tpu_custom_call.1} parent=1 // pred_region
      %72 = dma.done [#allocation6], 16
    $region53: #{tpu_custom_call.1} parent=1 // pred_fallthru
      _
    // Predicated region
    $region54: #{tpu_custom_call.1} parent=1 // pred_check
      _
    $region55: #{tpu_custom_call.1} parent=1 // pred_check_branch
      %74 = sbr.rel (0) target = $region57
    $region56: #{tpu_custom_call.1} parent=1 // pred_region
      %75 = dma.done [#allocation6], 16
    $region57: #{tpu_custom_call.1} parent=1 // pred_fallthru
      _
    %v77 = vld [vmem:[%s0] sm:$0xff]
    %v78 = vld [vmem:[%s0 + $0x8] sm:$0xff]
    %v79 = vpack.c.bf16 %v78, %v77
    %v80 = vld [vmem:[#allocation2] sm:$0xff]
    %v81 = vld [vmem:[#allocation2 + $0x8] sm:$0xf]
    %v82 = vld [vmem:[#allocation2 + $0xc] sm:$0xff]
    %v83 = vld [vmem:[#allocation2 + $0x14] sm:$0xf]
    %v84 = vld [vmem:[#allocation2 + $0x18] sm:$0xff]
    %v85 = vld [vmem:[#allocation2 + $0x20] sm:$0xf]
    %v86 = vld [vmem:[#allocation2 + $0x24] sm:$0xff]
    %v87 = vld [vmem:[#allocation2 + $0x2c] sm:$0xf]
    %v88 = vld [vmem:[#allocation2 + $0x30] sm:$0xff]
    %v89 = vld [vmem:[#allocation2 + $0x38] sm:$0xf]
    %v90 = vld [vmem:[#allocation2 + $0x3c] sm:$0xff]
    %v91 = vld [vmem:[#allocation2 + $0x44] sm:$0xf]
    %v92 = vld [vmem:[#allocation2 + $0x48] sm:$0xff]
    %v93 = vld [vmem:[#allocation2 + $0x50] sm:$0xf]
    %v94 = vld [vmem:[#allocation2 + $0x54] sm:$0xff]
    %v95 = vld [vmem:[#allocation2 + $0x5c] sm:$0xf]
    %v112 = vunpack.c.l.b16 %v80
    %v113 = vunpack.c.h.b16 %v80
    %v114 = vunpack.c.l.b16 %v81
    %v115 = vunpack.c.l.b16 %v82
    %v116 = vunpack.c.h.b16 %v82
    %v117 = vunpack.c.l.b16 %v83
    %v118 = vunpack.c.l.b16 %v84
    %v119 = vunpack.c.h.b16 %v84
    %v120 = vunpack.c.l.b16 %v85
    %v121 = vunpack.c.l.b16 %v86
    %v122 = vunpack.c.h.b16 %v86
    %v123 = vunpack.c.l.b16 %v87
    %v124 = vunpack.c.l.b16 %v88
    %v125 = vunpack.c.h.b16 %v88
    %v126 = vunpack.c.l.b16 %v89
    %v127 = vunpack.c.l.b16 %v90
    %v128 = vunpack.c.h.b16 %v90
    %v129 = vunpack.c.l.b16 %v91
    %v130 = vunpack.c.l.b16 %v92
    %v131 = vunpack.c.h.b16 %v92
    %v132 = vunpack.c.l.b16 %v93
    %v133 = vunpack.c.l.b16 %v94
    %v134 = vunpack.c.h.b16 %v94
    %v135 = vunpack.c.l.b16 %v95
    %v136 = vpack.c.b16 %v115, %v112
    %v137 = vpack.c.b16 %v116, %v113
    %v138 = vpack.c.b16 %v117, %v114
    %v139 = vpack.c.b16 %v121, %v118
    %v140 = vpack.c.b16 %v122, %v119
    %v141 = vpack.c.b16 %v123, %v120
    %v142 = vpack.c.b16 %v127, %v124
    %v143 = vpack.c.b16 %v128, %v125
    %v144 = vpack.c.b16 %v129, %v126
    %v145 = vpack.c.b16 %v133, %v130
    %v146 = vpack.c.b16 %v134, %v131
    %v147 = vpack.c.b16 %v135, %v132
    %vm160 = vcmask 523264
    %v162 = vsel %vm160, %v79, 0
    %164 = vmatprep.subr.bf16.mxu0 %v137
    %165 = vmatpush1.bf16.msra.mxu0 %v136
    %166 = vmatprep.subr.bf16.mxu0 %v140
    %167 = vmatpush1.bf16.msra.mxu0 %v139
    %168 = vmatprep.subr.bf16.mxu0 %v143
    %169 = vmatpush1.bf16.msra.mxu0 %v142
    %170 = vmatprep.subr.bf16.mxu0 %v146
    %171 = vmatpush1.bf16.msra.mxu0 %v145
    %172 = vmatprep.subr.bf16.mxu0 0
    %173 = vmatpush1.bf16.msra.mxu0 0
    %174 = vmatprep.subr.bf16.mxu0 0
    %175 = vmatpush1.bf16.msra.mxu0 0
    %176 = vmatprep.subr.bf16.mxu0 0
    %177 = vmatpush1.bf16.msra.mxu0 0
    %178 = vmatprep.subr.bf16.mxu0 0
    %179 = vmatpush1.bf16.msra.mxu0 0
    %180 = vmatprep.subr.bf16.mxu0 0
    %181 = vmatpush1.bf16.msra.mxu0 0
    %182 = vmatprep.subr.bf16.mxu0 0
    %183 = vmatpush1.bf16.msra.mxu0 0
    %184 = vmatprep.subr.bf16.mxu0 0
    %185 = vmatpush1.bf16.msra.mxu0 0
    %186 = vmatprep.subr.bf16.mxu0 0
    %187 = vmatpush1.bf16.msra.mxu0 0
    %188 = vmatprep.subr.bf16.mxu0 0
    %189 = vmatpush1.bf16.msra.mxu0 0
    %190 = vmatprep.subr.bf16.mxu0 0
    %191 = vmatpush1.bf16.msra.mxu0 0
    %192 = vmatprep.subr.bf16.mxu0 0
    %193 = vmatpush1.bf16.msra.mxu0 0
    %194 = vmatprep.subr.bf16.mxu0 0
    %195 = vmatpush1.bf16.msra.mxu0 0
    %196 = vmatprep.mubr.bf16.mxu0 0
    %197 = vmatmul.mubr.bf16.gmra.mrb[0].mxu0 %v162
    %v198 = vpop.f32.mrb[0].mxu0
    %v199 = vadd.f32 0.0, %v198
    %v200 = vpop.f32.mrb[0].mxu0
    %v201 = vadd.f32 0.0, %v200
    %v202 = vpop.f32.mrb[0].mxu0
    %v203 = vadd.f32 0.0, %v202
    %v204 = vpop.f32.mrb[0].mxu0
    %v205 = vadd.f32 0.0, %v204
    %206 = vdwg.mxu0
    %207 = vmatprep.subr.bf16.mxu0 0
    %208 = vmatpush1.bf16.msra.mxu0 %v138
    %209 = vmatprep.subr.bf16.mxu0 0
    %210 = vmatpush1.bf16.msra.mxu0 %v141
    %211 = vmatprep.subr.bf16.mxu0 0
    %212 = vmatpush1.bf16.msra.mxu0 %v144
    %213 = vmatprep.subr.bf16.mxu0 0
    %214 = vmatpush1.bf16.msra.mxu0 %v147
    %215 = vmatprep.subr.bf16.mxu0 0
    %216 = vmatpush1.bf16.msra.mxu0 0
    %217 = vmatprep.subr.bf16.mxu0 0
    %218 = vmatpush1.bf16.msra.mxu0 0
    %219 = vmatprep.subr.bf16.mxu0 0
    %220 = vmatpush1.bf16.msra.mxu0 0
    %221 = vmatprep.subr.bf16.mxu0 0
    %222 = vmatpush1.bf16.msra.mxu0 0
    %223 = vmatprep.subr.bf16.mxu0 0
    %224 = vmatpush1.bf16.msra.mxu0 0
    %225 = vmatprep.subr.bf16.mxu0 0
    %226 = vmatpush1.bf16.msra.mxu0 0
    %227 = vmatprep.subr.bf16.mxu0 0
    %228 = vmatpush1.bf16.msra.mxu0 0
    %229 = vmatprep.subr.bf16.mxu0 0
    %230 = vmatpush1.bf16.msra.mxu0 0
    %231 = vmatprep.subr.bf16.mxu0 0
    %232 = vmatpush1.bf16.msra.mxu0 0
    %233 = vmatprep.subr.bf16.mxu0 0
    %234 = vmatpush1.bf16.msra.mxu0 0
    %235 = vmatprep.subr.bf16.mxu0 0
    %236 = vmatpush1.bf16.msra.mxu0 0
    %237 = vmatprep.subr.bf16.mxu0 0
    %238 = vmatpush1.bf16.msra.mxu0 0
    %239 = vmatprep.mubr.bf16.mxu0 0
    %240 = vmatmul.mubr.bf16.gmra.mrb[0].mxu0 %v162
    %v241 = vpop.f32.mrb[0].mxu0
    %v242 = vadd.f32 0.0, %v241
    %v243 = vpop.f32.mrb[0].mxu0
    %v244 = vpop.f32.mrb[0].mxu0
    %v245 = vadd.f32 0.0, %v244
    %v246 = vpop.f32.mrb[0].mxu0
    %247 = vdwg.mxu0
    %v248 = vld [vmem:[%s9] sm:$0xf]
    %v249 = vld [vmem:[%s9 + $0x4] sm:$0xf]
    %v250 = vld [vmem:[%s9 + $0x8] sm:$0xf]
    %v251 = vld [vmem:[%s9 + $0xc] sm:$0xf]
    %v252 = vld [vmem:[%s9 + $0x10] sm:$0xf]
    %v253 = vld [vmem:[%s9 + $0x14] sm:$0xf]
    %v254 = vld [vmem:[%s9 + $0x18] sm:$0xf]
    %v255 = vld [vmem:[%s9 + $0x1c] sm:$0xf]
    %v256 = vmul.f32 %v199, %v199
    %v257 = vmul.f32 %v203, %v203
    %v258 = vpack.c.bf16 %v257, %v256
    %v267 = vunpack.c.l.b16 %v248
    %v268 = vunpack.c.l.b16 %v249
    %v269 = vunpack.c.l.b16 %v250
    %v270 = vunpack.c.l.b16 %v251
    %v271 = vunpack.c.l.b16 %v252
    %v272 = vunpack.c.l.b16 %v253
    %v273 = vunpack.c.l.b16 %v254
    %v274 = vunpack.c.l.b16 %v255
    %v275 = vpack.c.b16 %v268, %v267
    %v276 = vpack.c.b16 %v270, %v269
    %v277 = vpack.c.b16 %v272, %v271
    %v278 = vpack.c.b16 %v274, %v273
    %v284 = vsel %vm160, %v258, 0
    %286 = vmatprep.subr.bf16.mxu0 0
    %287 = vmatpush1.bf16.msra.mxu0 %v275
    %288 = vmatprep.subr.bf16.mxu0 0
    %289 = vmatpush1.bf16.msra.mxu0 %v276
    %290 = vmatprep.subr.bf16.mxu0 0
    %291 = vmatpush1.bf16.msra.mxu0 %v277
    %292 = vmatprep.subr.bf16.mxu0 0
    %293 = vmatpush1.bf16.msra.mxu0 %v278
    %294 = vmatprep.subr.bf16.mxu0 0
    %295 = vmatpush1.bf16.msra.mxu0 0
    %296 = vmatprep.subr.bf16.mxu0 0
    %297 = vmatpush1.bf16.msra.mxu0 0
    %298 = vmatprep.subr.bf16.mxu0 0
    %299 = vmatpush1.bf16.msra.mxu0 0
    %300 = vmatprep.subr.bf16.mxu0 0
    %301 = vmatpush1.bf16.msra.mxu0 0
    %302 = vmatprep.subr.bf16.mxu0 0
    %303 = vmatpush1.bf16.msra.mxu0 0
    %304 = vmatprep.subr.bf16.mxu0 0
    %305 = vmatpush1.bf16.msra.mxu0 0
    %306 = vmatprep.subr.bf16.mxu0 0
    %307 = vmatpush1.bf16.msra.mxu0 0
    %308 = vmatprep.subr.bf16.mxu0 0
    %309 = vmatpush1.bf16.msra.mxu0 0
    %310 = vmatprep.subr.bf16.mxu0 0
    %311 = vmatpush1.bf16.msra.mxu0 0
    %312 = vmatprep.subr.bf16.mxu0 0
    %313 = vmatpush1.bf16.msra.mxu0 0
    %314 = vmatprep.subr.bf16.mxu0 0
    %315 = vmatpush1.bf16.msra.mxu0 0
    %316 = vmatprep.subr.bf16.mxu0 0
    %317 = vmatpush1.bf16.msra.mxu0 0
    %318 = vmatprep.mubr.bf16.mxu0 0
    %319 = vmatmul.mubr.bf16.gmra.mrb[0].mxu0 %v284
    %v320 = vpop.f32.mrb[0].mxu0
    %v321 = vadd.f32 0.0, %v320
    %v322 = vpop.f32.mrb[0].mxu0
    %v323 = vpop.f32.mrb[0].mxu0
    %v324 = vadd.f32 0.0, %v323
    %v325 = vpop.f32.mrb[0].mxu0
    %326 = vdwg.mxu0
    %v327 = vmul.f32 %v201, %v201
    %v328 = vmul.f32 %v205, %v205
    %v329 = vpack.c.bf16 %v328, %v327
    %v331 = vsel %vm160, %v329, 0
    %333 = vmatprep.subr.bf16.mxu0 0
    %334 = vmatpush1.bf16.msra.mxu0 %v275
    %335 = vmatprep.subr.bf16.mxu0 0
    %336 = vmatpush1.bf16.msra.mxu0 %v276
    %337 = vmatprep.subr.bf16.mxu0 0
    %338 = vmatpush1.bf16.msra.mxu0 %v277
    %339 = vmatprep.subr.bf16.mxu0 0
    %340 = vmatpush1.bf16.msra.mxu0 %v278
    %341 = vmatprep.subr.bf16.mxu0 0
    %342 = vmatpush1.bf16.msra.mxu0 0
    %343 = vmatprep.subr.bf16.mxu0 0
    %344 = vmatpush1.bf16.msra.mxu0 0
    %345 = vmatprep.subr.bf16.mxu0 0
    %346 = vmatpush1.bf16.msra.mxu0 0
    %347 = vmatprep.subr.bf16.mxu0 0
    %348 = vmatpush1.bf16.msra.mxu0 0
    %349 = vmatprep.subr.bf16.mxu0 0
    %350 = vmatpush1.bf16.msra.mxu0 0
    %351 = vmatprep.subr.bf16.mxu0 0
    %352 = vmatpush1.bf16.msra.mxu0 0
    %353 = vmatprep.subr.bf16.mxu0 0
    %354 = vmatpush1.bf16.msra.mxu0 0
    %355 = vmatprep.subr.bf16.mxu0 0
    %356 = vmatpush1.bf16.msra.mxu0 0
    %357 = vmatprep.subr.bf16.mxu0 0
    %358 = vmatpush1.bf16.msra.mxu0 0
    %359 = vmatprep.subr.bf16.mxu0 0
    %360 = vmatpush1.bf16.msra.mxu0 0
    %361 = vmatprep.subr.bf16.mxu0 0
    %362 = vmatpush1.bf16.msra.mxu0 0
    %363 = vmatprep.subr.bf16.mxu0 0
    %364 = vmatpush1.bf16.msra.mxu0 0
    %365 = vmatprep.mubr.bf16.mxu0 0
    %366 = vmatmul.mubr.bf16.gmra.mrb[0].mxu0 %v331
    %v367 = vpop.f32.mrb[0].mxu0
    %v368 = vadd.f32 0.0, %v367
    %v369 = vpop.f32.mrb[0].mxu0
    %v370 = vpop.f32.mrb[0].mxu0
    %v371 = vadd.f32 0.0, %v370
    %v372 = vpop.f32.mrb[0].mxu0
    %373 = vdwg.mxu0
    %v374 = vmax.f32 %v321, 1e-12
    %v375 = vmax.f32 %v324, 1e-12
    %v376 = vrsqrt.pop %v374
    %v377 = vrsqrt.pop %v375
    %v378 = vmul.f32 %v199, %v376
    %v379 = vmul.f32 %v203, %v377
    %v380 = vld [vmem:[%s3] sm:$0x1]
    %v382 = vlaneseq
    %v383 = vshrl.u32 %v382, 7
    %v384 = vsub.s32 0, %v383
    %v385 = vrot.slane %v380, %v384
    %v387 = vmul.f32 %v378, %v385
    %v388 = vmul.f32 %v379, %v385
    %v389 = vpack.c.bf16 %v388, %v387
    %v390 = vmax.f32 %v368, 1e-12
    %v391 = vmax.f32 %v371, 1e-12
    %v392 = vrsqrt.pop %v390
    %v393 = vrsqrt.pop %v391
    %v394 = vmul.f32 %v201, %v392
    %v395 = vmul.f32 %v205, %v393
    %v396 = vld [vmem:[%s4] sm:$0x1]
    %v398 = vlaneseq
    %v399 = vshrl.u32 %v398, 7
    %v400 = vsub.s32 0, %v399
    %v401 = vrot.slane %v396, %v400
    %v403 = vmul.f32 %v394, %v401
    %v404 = vmul.f32 %v395, %v401
    %v405 = vpack.c.bf16 %v404, %v403
    %v406 = vpack.c.bf16 %v245, %v242
    %v407 = vld [vmem:[%s10] sm:$0xff]
    %v408 = vld [vmem:[%s10 + $0x8] sm:$0xff]
    %vm409 = vcmask 130048
    %v411 = vsel %vm409, %v389, 0
    %v414 = vsel %vm409, %v405, 0
    %416 = vmatprep.subr.bf16.mxu0 0
    %417 = vmatpush1.bf16.xpose.msra.mxu0 %v414
    %418 = vmatprep.subr.bf16.mxu0 0
    %419 = vmatpush1.bf16.xpose.msra.mxu0 0
    %420 = vmatprep.subr.bf16.mxu0 0
    %421 = vmatpush1.bf16.xpose.msra.mxu0 0
    %422 = vmatprep.subr.bf16.mxu0 0
    %423 = vmatpush1.bf16.xpose.msra.mxu0 0
    %424 = vmatprep.subr.bf16.mxu0 0
    %425 = vmatpush1.bf16.xpose.msra.mxu0 0
    %426 = vmatprep.subr.bf16.mxu0 0
    %427 = vmatpush1.bf16.xpose.msra.mxu0 0
    %428 = vmatprep.subr.bf16.mxu0 0
    %429 = vmatpush1.bf16.xpose.msra.mxu0 0
    %430 = vmatprep.subr.bf16.mxu0 0
    %431 = vmatpush1.bf16.xpose.msra.mxu0 0
    %432 = vmatprep.subr.bf16.mxu0 0
    %433 = vmatpush1.bf16.xpose.msra.mxu0 0
    %434 = vmatprep.subr.bf16.mxu0 0
    %435 = vmatpush1.bf16.xpose.msra.mxu0 0
    %436 = vmatprep.subr.bf16.mxu0 0
    %437 = vmatpush1.bf16.xpose.msra.mxu0 0
    %438 = vmatprep.subr.bf16.mxu0 0
    %439 = vmatpush1.bf16.xpose.msra.mxu0 0
    %440 = vmatprep.subr.bf16.mxu0 0
    %441 = vmatpush1.bf16.xpose.msra.mxu0 0
    %442 = vmatprep.subr.bf16.mxu0 0
    %443 = vmatpush1.bf16.xpose.msra.mxu0 0
    %444 = vmatprep.subr.bf16.mxu0 0
    %445 = vmatpush1.bf16.xpose.msra.mxu0 0
    %446 = vmatprep.subr.bf16.mxu0 0
    %447 = vmatpush1.bf16.xpose.msra.mxu0 0
    %448 = vmatprep.mubr.bf16.mxu0 0
    %449 = vmatmul.mubr.bf16.gmra.mrb[0].mxu0 %v411
    %v450 = vpop.f32.mrb[0].mxu0
    %v451 = vadd.f32 %v407, %v450
    %v452 = vpop.f32.mrb[0].mxu0
    %v453 = vpop.f32.mrb[0].mxu0
    %v454 = vadd.f32 %v408, %v453
    %v455 = vpop.f32.mrb[0].mxu0
    %456 = vdwg.mxu0
    %v457 = vsel %vm409, %v451, -inf
    %458 = vmax.xlane.f32.xlu0 %v457
    %v459 = vpop.xlane.xlu0 %458
    %v460 = vsel %vm409, %v454, -inf
    %461 = vmax.xlane.f32.xlu0 %v460
    %v462 = vpop.xlane.xlu0 %461
    %v463 = vsub.f32 %v451, %v459
    %v464 = vsub.f32 %v454, %v462
    %v465 = vmul.f32 %v463, 1.442695
    %v466 = vpow.pop %v465
    %v467 = vmul.f32 %v464, 1.442695
    %v468 = vpow.pop %v467
    %v469 = vsel %vm409, %v466, 0.0
    %470 = vadd.xlane.f32.xlu0 %v469
    %v471 = vpop.xlane.xlu0 %470
    %v472 = vsel %vm409, %v468, 0.0
    %473 = vadd.xlane.f32.xlu0 %v472
    %v474 = vpop.xlane.xlu0 %473
    %v475 = vrcp.pop %v471
    %v476 = vrcp.pop %v474
    %v477 = vmul.f32 %v466, %v475
    %v478 = vmul.f32 %v468, %v476
    %v479 = vpack.c.bf16 %v478, %v477
    %v481 = vsel %vm409, %v479, 0
    %483 = vmatprep.subr.bf16.mxu0 0
    %484 = vmatpush1.bf16.msra.mxu0 %v406
    %485 = vmatprep.subr.bf16.mxu0 0
    %486 = vmatpush1.bf16.msra.mxu0 0
    %487 = vmatprep.subr.bf16.mxu0 0
    %488 = vmatpush1.bf16.msra.mxu0 0
    %489 = vmatprep.subr.bf16.mxu0 0
    %490 = vmatpush1.bf16.msra.mxu0 0
    %491 = vmatprep.subr.bf16.mxu0 0
    %492 = vmatpush1.bf16.msra.mxu0 0
    %493 = vmatprep.subr.bf16.mxu0 0
    %494 = vmatpush1.bf16.msra.mxu0 0
    %495 = vmatprep.subr.bf16.mxu0 0
    %496 = vmatpush1.bf16.msra.mxu0 0
    %497 = vmatprep.subr.bf16.mxu0 0
    %498 = vmatpush1.bf16.msra.mxu0 0
    %499 = vmatprep.subr.bf16.mxu0 0
    %500 = vmatpush1.bf16.msra.mxu0 0
    %501 = vmatprep.subr.bf16.mxu0 0
    %502 = vmatpush1.bf16.msra.mxu0 0
    %503 = vmatprep.subr.bf16.mxu0 0
    %504 = vmatpush1.bf16.msra.mxu0 0
    %505 = vmatprep.subr.bf16.mxu0 0
    %506 = vmatpush1.bf16.msra.mxu0 0
    %507 = vmatprep.subr.bf16.mxu0 0
    %508 = vmatpush1.bf16.msra.mxu0 0
    %509 = vmatprep.subr.bf16.mxu0 0
    %510 = vmatpush1.bf16.msra.mxu0 0
    %511 = vmatprep.subr.bf16.mxu0 0
    %512 = vmatpush1.bf16.msra.mxu0 0
    %513 = vmatprep.subr.bf16.mxu0 0
    %514 = vmatpush1.bf16.msra.mxu0 0
    %515 = vmatprep.mubr.bf16.mxu0 0
    %516 = vmatmul.mubr.bf16.gmra.mrb[0].mxu0 %v481
    %v517 = vpop.f32.mrb[0].mxu0
    %v518 = vadd.f32 0.0, %v517
    %v519 = vpop.f32.mrb[0].mxu0
    %v520 = vpop.f32.mrb[0].mxu0
    %v521 = vadd.f32 0.0, %v520
    %v522 = vpop.f32.mrb[0].mxu0
    %523 = vdwg.mxu0
    %525 = vrot.lane.b32.xlu0 %v389, 112
    %v526 = vpop.permute.xlu0 %525
    %528 = vrot.lane.b32.xlu0 %v405, 112
    %v529 = vpop.permute.xlu0 %528
    %v531 = vsel %vm409, %v526, 0
    %v534 = vsel %vm409, %v529, 0
    %536 = vmatprep.subr.bf16.mxu0 0
    %537 = vmatpush1.bf16.xpose.msra.mxu0 %v534
    %538 = vmatprep.subr.bf16.mxu0 0
    %539 = vmatpush1.bf16.xpose.msra.mxu0 0
    %540 = vmatprep.subr.bf16.mxu0 0
    %541 = vmatpush1.bf16.xpose.msra.mxu0 0
    %542 = vmatprep.subr.bf16.mxu0 0
    %543 = vmatpush1.bf16.xpose.msra.mxu0 0
    %544 = vmatprep.subr.bf16.mxu0 0
    %545 = vmatpush1.bf16.xpose.msra.mxu0 0
    %546 = vmatprep.subr.bf16.mxu0 0
    %547 = vmatpush1.bf16.xpose.msra.mxu0 0
    %548 = vmatprep.subr.bf16.mxu0 0
    %549 = vmatpush1.bf16.xpose.msra.mxu0 0
    %550 = vmatprep.subr.bf16.mxu0 0
    %551 = vmatpush1.bf16.xpose.msra.mxu0 0
    %552 = vmatprep.subr.bf16.mxu0 0
    %553 = vmatpush1.bf16.xpose.msra.mxu0 0
    %554 = vmatprep.subr.bf16.mxu0 0
    %555 = vmatpush1.bf16.xpose.msra.mxu0 0
    %556 = vmatprep.subr.bf16.mxu0 0
    %557 = vmatpush1.bf16.xpose.msra.mxu0 0
    %558 = vmatprep.subr.bf16.mxu0 0
    %559 = vmatpush1.bf16.xpose.msra.mxu0 0
    %560 = vmatprep.subr.bf16.mxu0 0
    %561 = vmatpush1.bf16.xpose.msra.mxu0 0
    %562 = vmatprep.subr.bf16.mxu0 0
    %563 = vmatpush1.bf16.xpose.msra.mxu0 0
    %564 = vmatprep.subr.bf16.mxu0 0
    %565 = vmatpush1.bf16.xpose.msra.mxu0 0
    %566 = vmatprep.subr.bf16.mxu0 0
    %567 = vmatpush1.bf16.xpose.msra.mxu0 0
    %568 = vmatprep.mubr.bf16.mxu0 0
    %569 = vmatmul.mubr.bf16.gmra.mrb[0].mxu0 %v531
    %v570 = vpop.f32.mrb[0].mxu0
    %v571 = vadd.f32 %v407, %v570
    %v572 = vpop.f32.mrb[0].mxu0
    %v573 = vpop.f32.mrb[0].mxu0
    %v574 = vadd.f32 %v408, %v573
    %v575 = vpop.f32.mrb[0].mxu0
    %576 = vdwg.mxu0
    %v577 = vsel %vm409, %v571, -inf
    %578 = vmax.xlane.f32.xlu0 %v577
    %v579 = vpop.xlane.xlu0 %578
    %v580 = vsel %vm409, %v574, -inf
    %581 = vmax.xlane.f32.xlu0 %v580
    %v582 = vpop.xlane.xlu0 %581
    %v583 = vsub.f32 %v571, %v579
    %v584 = vsub.f32 %v574, %v582
    %v585 = vmul.f32 %v583, 1.442695
    %v586 = vpow.pop %v585
    %v587 = vmul.f32 %v584, 1.442695
    %v588 = vpow.pop %v587
    %v589 = vsel %vm409, %v586, 0.0
    %590 = vadd.xlane.f32.xlu0 %v589
    %v591 = vpop.xlane.xlu0 %590
    %v592 = vsel %vm409, %v588, 0.0
    %593 = vadd.xlane.f32.xlu0 %v592
    %v594 = vpop.xlane.xlu0 %593
    %v595 = vrcp.pop %v591
    %v596 = vrcp.pop %v594
    %v597 = vmul.f32 %v586, %v595
    %v598 = vmul.f32 %v588, %v596
    %v599 = vpack.c.bf16 %v598, %v597
    %601 = vrot.lane.b32.xlu0 %v406, 112
    %v602 = vpop.permute.xlu0 %601
    %v605 = vsel %vm409, %v599, 0
    %607 = vmatprep.subr.bf16.mxu0 0
    %608 = vmatpush1.bf16.msra.mxu0 %v602
    %609 = vmatprep.subr.bf16.mxu0 0
    %610 = vmatpush1.bf16.msra.mxu0 0
    %611 = vmatprep.subr.bf16.mxu0 0
    %612 = vmatpush1.bf16.msra.mxu0 0
    %613 = vmatprep.subr.bf16.mxu0 0
    %614 = vmatpush1.bf16.msra.mxu0 0
    %615 = vmatprep.subr.bf16.mxu0 0
    %616 = vmatpush1.bf16.msra.mxu0 0
    %617 = vmatprep.subr.bf16.mxu0 0
    %618 = vmatpush1.bf16.msra.mxu0 0
    %619 = vmatprep.subr.bf16.mxu0 0
    %620 = vmatpush1.bf16.msra.mxu0 0
    %621 = vmatprep.subr.bf16.mxu0 0
    %622 = vmatpush1.bf16.msra.mxu0 0
    %623 = vmatprep.subr.bf16.mxu0 0
    %624 = vmatpush1.bf16.msra.mxu0 0
    %625 = vmatprep.subr.bf16.mxu0 0
    %626 = vmatpush1.bf16.msra.mxu0 0
    %627 = vmatprep.subr.bf16.mxu0 0
    %628 = vmatpush1.bf16.msra.mxu0 0
    %629 = vmatprep.subr.bf16.mxu0 0
    %630 = vmatpush1.bf16.msra.mxu0 0
    %631 = vmatprep.subr.bf16.mxu0 0
    %632 = vmatpush1.bf16.msra.mxu0 0
    %633 = vmatprep.subr.bf16.mxu0 0
    %634 = vmatpush1.bf16.msra.mxu0 0
    %635 = vmatprep.subr.bf16.mxu0 0
    %636 = vmatpush1.bf16.msra.mxu0 0
    %637 = vmatprep.subr.bf16.mxu0 0
    %638 = vmatpush1.bf16.msra.mxu0 0
    %639 = vmatprep.mubr.bf16.mxu0 0
    %640 = vmatmul.mubr.bf16.gmra.mrb[0].mxu0 %v605
    %v641 = vpop.f32.mrb[0].mxu0
    %v642 = vadd.f32 0.0, %v641
    %v643 = vpop.f32.mrb[0].mxu0
    %v644 = vpop.f32.mrb[0].mxu0
    %v645 = vadd.f32 0.0, %v644
    %v646 = vpop.f32.mrb[0].mxu0
    %647 = vdwg.mxu0
    %648 = vrot.lane.b32.xlu0 %v389, 96
    %v649 = vpop.permute.xlu0 %648
    %650 = vrot.lane.b32.xlu0 %v405, 96
    %v651 = vpop.permute.xlu0 %650
    %v653 = vsel %vm409, %v649, 0
    %v656 = vsel %vm409, %v651, 0
    %658 = vmatprep.subr.bf16.mxu0 0
    %659 = vmatpush1.bf16.xpose.msra.mxu0 %v656
    %660 = vmatprep.subr.bf16.mxu0 0
    %661 = vmatpush1.bf16.xpose.msra.mxu0 0
    %662 = vmatprep.subr.bf16.mxu0 0
    %663 = vmatpush1.bf16.xpose.msra.mxu0 0
    %664 = vmatprep.subr.bf16.mxu0 0
    %665 = vmatpush1.bf16.xpose.msra.mxu0 0
    %666 = vmatprep.subr.bf16.mxu0 0
    %667 = vmatpush1.bf16.xpose.msra.mxu0 0
    %668 = vmatprep.subr.bf16.mxu0 0
    %669 = vmatpush1.bf16.xpose.msra.mxu0 0
    %670 = vmatprep.subr.bf16.mxu0 0
    %671 = vmatpush1.bf16.xpose.msra.mxu0 0
    %672 = vmatprep.subr.bf16.mxu0 0
    %673 = vmatpush1.bf16.xpose.msra.mxu0 0
    %674 = vmatprep.subr.bf16.mxu0 0
    %675 = vmatpush1.bf16.xpose.msra.mxu0 0
    %676 = vmatprep.subr.bf16.mxu0 0
    %677 = vmatpush1.bf16.xpose.msra.mxu0 0
    %678 = vmatprep.subr.bf16.mxu0 0
    %679 = vmatpush1.bf16.xpose.msra.mxu0 0
    %680 = vmatprep.subr.bf16.mxu0 0
    %681 = vmatpush1.bf16.xpose.msra.mxu0 0
    %682 = vmatprep.subr.bf16.mxu0 0
    %683 = vmatpush1.bf16.xpose.msra.mxu0 0
    %684 = vmatprep.subr.bf16.mxu0 0
    %685 = vmatpush1.bf16.xpose.msra.mxu0 0
    %686 = vmatprep.subr.bf16.mxu0 0
    %687 = vmatpush1.bf16.xpose.msra.mxu0 0
    %688 = vmatprep.subr.bf16.mxu0 0
    %689 = vmatpush1.bf16.xpose.msra.mxu0 0
    %690 = vmatprep.mubr.bf16.mxu0 0
    %691 = vmatmul.mubr.bf16.gmra.mrb[0].mxu0 %v653
    %v692 = vpop.f32.mrb[0].mxu0
    %v693 = vadd.f32 %v407, %v692
    %v694 = vpop.f32.mrb[0].mxu0
    %v695 = vpop.f32.mrb[0].mxu0
    %v696 = vadd.f32 %v408, %v695
    %v697 = vpop.f32.mrb[0].mxu0
    %698 = vdwg.mxu0
    %v699 = vsel %vm409, %v693, -inf
    %700 = vmax.xlane.f32.xlu0 %v699
    %v701 = vpop.xlane.xlu0 %700
    %v702 = vsel %vm409, %v696, -inf
    %703 = vmax.xlane.f32.xlu0 %v702
    %v704 = vpop.xlane.xlu0 %703
    %v705 = vsub.f32 %v693, %v701
    %v706 = vsub.f32 %v696, %v704
    %v707 = vmul.f32 %v705, 1.442695
    %v708 = vpow.pop %v707
    %v709 = vmul.f32 %v706, 1.442695
    %v710 = vpow.pop %v709
    %v711 = vsel %vm409, %v708, 0.0
    %712 = vadd.xlane.f32.xlu0 %v711
    %v713 = vpop.xlane.xlu0 %712
    %v714 = vsel %vm409, %v710, 0.0
    %715 = vadd.xlane.f32.xlu0 %v714
    %v716 = vpop.xlane.xlu0 %715
    %v717 = vrcp.pop %v713
    %v718 = vrcp.pop %v716
    %v719 = vmul.f32 %v708, %v717
    %v720 = vmul.f32 %v710, %v718
    %v721 = vpack.c.bf16 %v720, %v719
    %722 = vrot.lane.b32.xlu0 %v406, 96
    %v723 = vpop.permute.xlu0 %722
    %v726 = vsel %vm409, %v721, 0
    %728 = vmatprep.subr.bf16.mxu0 0
    %729 = vmatpush1.bf16.msra.mxu0 %v723
    %730 = vmatprep.subr.bf16.mxu0 0
    %731 = vmatpush1.bf16.msra.mxu0 0
    %732 = vmatprep.subr.bf16.mxu0 0
    %733 = vmatpush1.bf16.msra.mxu0 0
    %734 = vmatprep.subr.bf16.mxu0 0
    %735 = vmatpush1.bf16.msra.mxu0 0
    %736 = vmatprep.subr.bf16.mxu0 0
    %737 = vmatpush1.bf16.msra.mxu0 0
    %738 = vmatprep.subr.bf16.mxu0 0
    %739 = vmatpush1.bf16.msra.mxu0 0
    %740 = vmatprep.subr.bf16.mxu0 0
    %741 = vmatpush1.bf16.msra.mxu0 0
    %742 = vmatprep.subr.bf16.mxu0 0
    %743 = vmatpush1.bf16.msra.mxu0 0
    %744 = vmatprep.subr.bf16.mxu0 0
    %745 = vmatpush1.bf16.msra.mxu0 0
    %746 = vmatprep.subr.bf16.mxu0 0
    %747 = vmatpush1.bf16.msra.mxu0 0
    %748 = vmatprep.subr.bf16.mxu0 0
    %749 = vmatpush1.bf16.msra.mxu0 0
    %750 = vmatprep.subr.bf16.mxu0 0
    %751 = vmatpush1.bf16.msra.mxu0 0
    %752 = vmatprep.subr.bf16.mxu0 0
    %753 = vmatpush1.bf16.msra.mxu0 0
    %754 = vmatprep.subr.bf16.mxu0 0
    %755 = vmatpush1.bf16.msra.mxu0 0
    %756 = vmatprep.subr.bf16.mxu0 0
    %757 = vmatpush1.bf16.msra.mxu0 0
    %758 = vmatprep.subr.bf16.mxu0 0
    %759 = vmatpush1.bf16.msra.mxu0 0
    %760 = vmatprep.mubr.bf16.mxu0 0
    %761 = vmatmul.mubr.bf16.gmra.mrb[0].mxu0 %v726
    %v762 = vpop.f32.mrb[0].mxu0
    %v763 = vadd.f32 0.0, %v762
    %v764 = vpop.f32.mrb[0].mxu0
    %v765 = vpop.f32.mrb[0].mxu0
    %v766 = vadd.f32 0.0, %v765
    %v767 = vpop.f32.mrb[0].mxu0
    %768 = vdwg.mxu0
    %769 = vrot.lane.b32.xlu0 %v389, 80
    %v770 = vpop.permute.xlu0 %769
    %771 = vrot.lane.b32.xlu0 %v405, 80
    %v772 = vpop.permute.xlu0 %771
    %v774 = vsel %vm409, %v770, 0
    %v777 = vsel %vm409, %v772, 0
    %779 = vmatprep.subr.bf16.mxu0 0
    %780 = vmatpush1.bf16.xpose.msra.mxu0 %v777
    %781 = vmatprep.subr.bf16.mxu0 0
    %782 = vmatpush1.bf16.xpose.msra.mxu0 0
    %783 = vmatprep.subr.bf16.mxu0 0
    %784 = vmatpush1.bf16.xpose.msra.mxu0 0
    %785 = vmatprep.subr.bf16.mxu0 0
    %786 = vmatpush1.bf16.xpose.msra.mxu0 0
    %787 = vmatprep.subr.bf16.mxu0 0
    %788 = vmatpush1.bf16.xpose.msra.mxu0 0
    %789 = vmatprep.subr.bf16.mxu0 0
    %790 = vmatpush1.bf16.xpose.msra.mxu0 0
    %791 = vmatprep.subr.bf16.mxu0 0
    %792 = vmatpush1.bf16.xpose.msra.mxu0 0
    %793 = vmatprep.subr.bf16.mxu0 0
    %794 = vmatpush1.bf16.xpose.msra.mxu0 0
    %795 = vmatprep.subr.bf16.mxu0 0
    %796 = vmatpush1.bf16.xpose.msra.mxu0 0
    %797 = vmatprep.subr.bf16.mxu0 0
    %798 = vmatpush1.bf16.xpose.msra.mxu0 0
    %799 = vmatprep.subr.bf16.mxu0 0
    %800 = vmatpush1.bf16.xpose.msra.mxu0 0
    %801 = vmatprep.subr.bf16.mxu0 0
    %802 = vmatpush1.bf16.xpose.msra.mxu0 0
    %803 = vmatprep.subr.bf16.mxu0 0
    %804 = vmatpush1.bf16.xpose.msra.mxu0 0
    %805 = vmatprep.subr.bf16.mxu0 0
    %806 = vmatpush1.bf16.xpose.msra.mxu0 0
    %807 = vmatprep.subr.bf16.mxu0 0
    %808 = vmatpush1.bf16.xpose.msra.mxu0 0
    %809 = vmatprep.subr.bf16.mxu0 0
    %810 = vmatpush1.bf16.xpose.msra.mxu0 0
    %811 = vmatprep.mubr.bf16.mxu0 0
    %812 = vmatmul.mubr.bf16.gmra.mrb[0].mxu0 %v774
    %v813 = vpop.f32.mrb[0].mxu0
    %v814 = vadd.f32 %v407, %v813
    %v815 = vpop.f32.mrb[0].mxu0
    %v816 = vpop.f32.mrb[0].mxu0
    %v817 = vadd.f32 %v408, %v816
    %v818 = vpop.f32.mrb[0].mxu0
    %819 = vdwg.mxu0
    %v820 = vsel %vm409, %v814, -inf
    %821 = vmax.xlane.f32.xlu0 %v820
    %v822 = vpop.xlane.xlu0 %821
    %v823 = vsel %vm409, %v817, -inf
    %824 = vmax.xlane.f32.xlu0 %v823
    %v825 = vpop.xlane.xlu0 %824
    %v826 = vsub.f32 %v814, %v822
    %v827 = vsub.f32 %v817, %v825
    %v828 = vmul.f32 %v826, 1.442695
    %v829 = vpow.pop %v828
    %v830 = vmul.f32 %v827, 1.442695
    %v831 = vpow.pop %v830
    %v832 = vsel %vm409, %v829, 0.0
    %833 = vadd.xlane.f32.xlu0 %v832
    %v834 = vpop.xlane.xlu0 %833
    %v835 = vsel %vm409, %v831, 0.0
    %836 = vadd.xlane.f32.xlu0 %v835
    %v837 = vpop.xlane.xlu0 %836
    %v838 = vrcp.pop %v834
    %v839 = vrcp.pop %v837
    %v840 = vmul.f32 %v829, %v838
    %v841 = vmul.f32 %v831, %v839
    %v842 = vpack.c.bf16 %v841, %v840
    %843 = vrot.lane.b32.xlu0 %v406, 80
    %v844 = vpop.permute.xlu0 %843
    %v847 = vsel %vm409, %v842, 0
    %849 = vmatprep.subr.bf16.mxu0 0
    %850 = vmatpush1.bf16.msra.mxu0 %v844
    %851 = vmatprep.subr.bf16.mxu0 0
    %852 = vmatpush1.bf16.msra.mxu0 0
    %853 = vmatprep.subr.bf16.mxu0 0
    %854 = vmatpush1.bf16.msra.mxu0 0
    %855 = vmatprep.subr.bf16.mxu0 0
    %856 = vmatpush1.bf16.msra.mxu0 0
    %857 = vmatprep.subr.bf16.mxu0 0
    %858 = vmatpush1.bf16.msra.mxu0 0
    %859 = vmatprep.subr.bf16.mxu0 0
    %860 = vmatpush1.bf16.msra.mxu0 0
    %861 = vmatprep.subr.bf16.mxu0 0
    %862 = vmatpush1.bf16.msra.mxu0 0
    %863 = vmatprep.subr.bf16.mxu0 0
    %864 = vmatpush1.bf16.msra.mxu0 0
    %865 = vmatprep.subr.bf16.mxu0 0
    %866 = vmatpush1.bf16.msra.mxu0 0
    %867 = vmatprep.subr.bf16.mxu0 0
    %868 = vmatpush1.bf16.msra.mxu0 0
    %869 = vmatprep.subr.bf16.mxu0 0
    %870 = vmatpush1.bf16.msra.mxu0 0
    %871 = vmatprep.subr.bf16.mxu0 0
    %872 = vmatpush1.bf16.msra.mxu0 0
    %873 = vmatprep.subr.bf16.mxu0 0
    %874 = vmatpush1.bf16.msra.mxu0 0
    %875 = vmatprep.subr.bf16.mxu0 0
    %876 = vmatpush1.bf16.msra.mxu0 0
    %877 = vmatprep.subr.bf16.mxu0 0
    %878 = vmatpush1.bf16.msra.mxu0 0
    %879 = vmatprep.subr.bf16.mxu0 0
    %880 = vmatpush1.bf16.msra.mxu0 0
    %881 = vmatprep.mubr.bf16.mxu0 0
    %882 = vmatmul.mubr.bf16.gmra.mrb[0].mxu0 %v847
    %v883 = vpop.f32.mrb[0].mxu0
    %v884 = vadd.f32 0.0, %v883
    %v885 = vpop.f32.mrb[0].mxu0
    %v886 = vpop.f32.mrb[0].mxu0
    %v887 = vadd.f32 0.0, %v886
    %v888 = vpop.f32.mrb[0].mxu0
    %889 = vdwg.mxu0
    %892 = vrot.lane.b32.xlu0 %v642, 16
    %v893 = vpop.permute.xlu0 %892
    %894 = vrot.lane.b32.xlu0 %v645, 16
    %v895 = vpop.permute.xlu0 %894
    %900 = vrot.lane.b32.xlu0 %v763, 32
    %v901 = vpop.permute.xlu0 %900
    %902 = vrot.lane.b32.xlu0 %v766, 32
    %v903 = vpop.permute.xlu0 %902
    %908 = vrot.lane.b32.xlu0 %v884, 48
    %v909 = vpop.permute.xlu0 %908
    %910 = vrot.lane.b32.xlu0 %v887, 48
    %v911 = vpop.permute.xlu0 %910
    %v914 = vsel %vm409, %v518, %v893
    %v915 = vsel %vm409, %v521, %v895
    %vm916 = vcmask 261120
    %v917 = vsel %vm916, %v914, %v901
    %v918 = vsel %vm916, %v915, %v903
    %vm919 = vcmask 392192
    %v920 = vsel %vm919, %v917, %v909
    %v921 = vsel %vm919, %v918, %v911
    %v922 = vpack.c.bf16 %v921, %v920
    %v923 = vld [vmem:[%s2] sm:$0xf]
    %v924 = vld [vmem:[%s2 + $0x4] sm:$0xf]
    %v925 = vld [vmem:[%s2 + $0x8] sm:$0xf]
    %v926 = vld [vmem:[%s2 + $0xc] sm:$0xf]
    %v927 = vld [vmem:[%s2 + $0x10] sm:$0xf]
    %v928 = vld [vmem:[%s2 + $0x14] sm:$0xf]
    %v929 = vld [vmem:[%s2 + $0x18] sm:$0xf]
    %v930 = vld [vmem:[%s2 + $0x1c] sm:$0xf]
    %v939 = vunpack.c.l.b16 %v923
    %v940 = vunpack.c.l.b16 %v924
    %v941 = vunpack.c.l.b16 %v925
    %v942 = vunpack.c.l.b16 %v926
    %v943 = vunpack.c.l.b16 %v927
    %v944 = vunpack.c.l.b16 %v928
    %v945 = vunpack.c.l.b16 %v929
    %v946 = vunpack.c.l.b16 %v930
    %v947 = vpack.c.b16 %v940, %v939
    %v948 = vpack.c.b16 %v942, %v941
    %v949 = vpack.c.b16 %v944, %v943
    %v950 = vpack.c.b16 %v946, %v945
    %v956 = vsel %vm160, %v922, 0
    %958 = vmatprep.subr.bf16.mxu0 0
    %959 = vmatpush1.bf16.msra.mxu0 %v947
    %960 = vmatprep.subr.bf16.mxu0 0
    %961 = vmatpush1.bf16.msra.mxu0 %v948
    %962 = vmatprep.subr.bf16.mxu0 0
    %963 = vmatpush1.bf16.msra.mxu0 %v949
    %964 = vmatprep.subr.bf16.mxu0 0
    %965 = vmatpush1.bf16.msra.mxu0 %v950
    %966 = vmatprep.subr.bf16.mxu0 0
    %967 = vmatpush1.bf16.msra.mxu0 0
    %968 = vmatprep.subr.bf16.mxu0 0
    %969 = vmatpush1.bf16.msra.mxu0 0
    %970 = vmatprep.subr.bf16.mxu0 0
    %971 = vmatpush1.bf16.msra.mxu0 0
    %972 = vmatprep.subr.bf16.mxu0 0
    %973 = vmatpush1.bf16.msra.mxu0 0
    %974 = vmatprep.subr.bf16.mxu0 0
    %975 = vmatpush1.bf16.msra.mxu0 0
    %976 = vmatprep.subr.bf16.mxu0 0
    %977 = vmatpush1.bf16.msra.mxu0 0
    %978 = vmatprep.subr.bf16.mxu0 0
    %979 = vmatpush1.bf16.msra.mxu0 0
    %980 = vmatprep.subr.bf16.mxu0 0
    %981 = vmatpush1.bf16.msra.mxu0 0
    %982 = vmatprep.subr.bf16.mxu0 0
    %983 = vmatpush1.bf16.msra.mxu0 0
    %984 = vmatprep.subr.bf16.mxu0 0
    %985 = vmatpush1.bf16.msra.mxu0 0
    %986 = vmatprep.subr.bf16.mxu0 0
    %987 = vmatpush1.bf16.msra.mxu0 0
    %988 = vmatprep.subr.bf16.mxu0 0
    %989 = vmatpush1.bf16.msra.mxu0 0
    %990 = vmatprep.mubr.bf16.mxu0 0
    %991 = vmatmul.mubr.bf16.gmra.mrb[0].mxu0 %v956
    %v992 = vpop.f32.mrb[0].mxu0
    %v993 = vadd.f32 0.0, %v992
    %v994 = vpop.f32.mrb[0].mxu0
    %v995 = vpop.f32.mrb[0].mxu0
    %v996 = vadd.f32 0.0, %v995
    %v997 = vpop.f32.mrb[0].mxu0
    %998 = vdwg.mxu0
    %v999 = vld [vmem:[#allocation5] sm:$0x1]
    %v1000 = vmul.f32 %v993, %v993
    %v1001 = vmul.f32 %v996, %v996
    %v1002 = vsel %vm160, %v1000, 0.0
    %1003 = vadd.xlane.f32.xlu0 %v1002
    %v1004 = vpop.xlane.xlu0 %1003
    %v1005 = vsel %vm160, %v1001, 0.0
    %1006 = vadd.xlane.f32.xlu0 %v1005
    %v1007 = vpop.xlane.xlu0 %1006
    %v1008 = vmax.f32 %v1004, 1e-12
    %v1009 = vmax.f32 %v1007, 1e-12
    %v1010 = vrsqrt.pop %v1008
    %v1011 = vrsqrt.pop %v1009
    %v1012 = vmul.f32 %v993, %v1010
    %v1013 = vmul.f32 %v996, %v1011
    %v1014 = vsub.f32 %v1012, %v77
    %v1015 = vsub.f32 %v1013, %v78
    %v1017 = vlaneseq
    %v1018 = vshrl.u32 %v1017, 7
    %v1019 = vsub.s32 0, %v1018
    %v1020 = vrot.slane %v999, %v1019
    %v1022 = vmul.f32 %v1020, %v1014
    %v1023 = vmul.f32 %v1020, %v1015
    %v1024 = vadd.f32 %v77, %v1022
    %v1025 = vadd.f32 %v78, %v1023
    %v1026 = vmul.f32 %v1024, %v1024
    %v1027 = vmul.f32 %v1025, %v1025
    %v1028 = vsel %vm160, %v1026, 0.0
    %1029 = vadd.xlane.f32.xlu0 %v1028
    %v1030 = vpop.xlane.xlu0 %1029
    %v1031 = vsel %vm160, %v1027, 0.0
    %1032 = vadd.xlane.f32.xlu0 %v1031
    %v1033 = vpop.xlane.xlu0 %1032
    %v1034 = vmax.f32 %v1030, 1e-12
    %v1035 = vmax.f32 %v1033, 1e-12
    %v1036 = vrsqrt.pop %v1034
    %v1037 = vrsqrt.pop %v1035
    %v1038 = vmul.f32 %v1024, %v1036
    %v1039 = vmul.f32 %v1025, %v1037
    %v1040 = vpack.c.bf16 %v1039, %v1038
    %v1041 = vld [vmem:[%s5] sm:$0xff]
    %v1042 = vld [vmem:[%s5 + $0x8] sm:$0xff]
    %v1043 = vld [vmem:[%s5 + $0x10] sm:$0xff]
    %v1044 = vld [vmem:[%s5 + $0x18] sm:$0xff]
    %v1045 = vld [vmem:[%s5 + $0x20] sm:$0xff]
    %v1046 = vld [vmem:[%s5 + $0x28] sm:$0xff]
    %v1047 = vld [vmem:[%s5 + $0x30] sm:$0xff]
    %v1048 = vld [vmem:[%s5 + $0x38] sm:$0xff]
    %v1049 = vld [vmem:[%s5 + $0x40] sm:$0xff]
    %v1050 = vld [vmem:[%s5 + $0x48] sm:$0xff]
    %v1051 = vld [vmem:[%s5 + $0x50] sm:$0xff]
    %v1052 = vld [vmem:[%s5 + $0x58] sm:$0xff]
    %v1053 = vld [vmem:[%s5 + $0x60] sm:$0xff]
    %v1054 = vld [vmem:[%s5 + $0x68] sm:$0xff]
    %v1055 = vld [vmem:[%s5 + $0x70] sm:$0xff]
    %v1056 = vld [vmem:[%s5 + $0x78] sm:$0xff]
    %v1073 = vunpack.c.l.b16 %v1041
    %v1074 = vunpack.c.h.b16 %v1041
    %v1075 = vunpack.c.l.b16 %v1042
    %v1076 = vunpack.c.h.b16 %v1042
    %v1077 = vunpack.c.l.b16 %v1043
    %v1078 = vunpack.c.h.b16 %v1043
    %v1079 = vunpack.c.l.b16 %v1044
    %v1080 = vunpack.c.h.b16 %v1044
    %v1081 = vunpack.c.l.b16 %v1045
    %v1082 = vunpack.c.h.b16 %v1045
    %v1083 = vunpack.c.l.b16 %v1046
    %v1084 = vunpack.c.h.b16 %v1046
    %v1085 = vunpack.c.l.b16 %v1047
    %v1086 = vunpack.c.h.b16 %v1047
    %v1087 = vunpack.c.l.b16 %v1048
    %v1088 = vunpack.c.h.b16 %v1048
    %v1089 = vunpack.c.l.b16 %v1049
    %v1090 = vunpack.c.h.b16 %v1049
    %v1091 = vunpack.c.l.b16 %v1050
    %v1092 = vunpack.c.h.b16 %v1050
    %v1093 = vunpack.c.l.b16 %v1051
    %v1094 = vunpack.c.h.b16 %v1051
    %v1095 = vunpack.c.l.b16 %v1052
    %v1096 = vunpack.c.h.b16 %v1052
    %v1097 = vunpack.c.l.b16 %v1053
    %v1098 = vunpack.c.h.b16 %v1053
    %v1099 = vunpack.c.l.b16 %v1054
    %v1100 = vunpack.c.h.b16 %v1054
    %v1101 = vunpack.c.l.b16 %v1055
    %v1102 = vunpack.c.h.b16 %v1055
    %v1103 = vunpack.c.l.b16 %v1056
    %v1104 = vunpack.c.h.b16 %v1056
    %v1105 = vpack.c.b16 %v1077, %v1073
    %v1106 = vpack.c.b16 %v1078, %v1074
    %v1107 = vpack.c.b16 %v1079, %v1075
    %v1108 = vpack.c.b16 %v1080, %v1076
    %v1109 = vpack.c.b16 %v1085, %v1081
    %v1110 = vpack.c.b16 %v1086, %v1082
    %v1111 = vpack.c.b16 %v1087, %v1083
    %v1112 = vpack.c.b16 %v1088, %v1084
    %v1113 = vpack.c.b16 %v1093, %v1089
    %v1114 = vpack.c.b16 %v1094, %v1090
    %v1115 = vpack.c.b16 %v1095, %v1091
    %v1116 = vpack.c.b16 %v1096, %v1092
    %v1117 = vpack.c.b16 %v1101, %v1097
    %v1118 = vpack.c.b16 %v1102, %v1098
    %v1119 = vpack.c.b16 %v1103, %v1099
    %v1120 = vpack.c.b16 %v1104, %v1100
    %v1138 = vsel %vm160, %v1040, 0
    %1140 = vmatprep.subr.bf16.mxu0 %v1106
    %1141 = vmatpush1.bf16.msra.mxu0 %v1105
    %1142 = vmatprep.subr.bf16.mxu0 %v1110
    %1143 = vmatpush1.bf16.msra.mxu0 %v1109
    %1144 = vmatprep.subr.bf16.mxu0 %v1114
    %1145 = vmatpush1.bf16.msra.mxu0 %v1113
    %1146 = vmatprep.subr.bf16.mxu0 %v1118
    %1147 = vmatpush1.bf16.msra.mxu0 %v1117
    %1148 = vmatprep.subr.bf16.mxu0 0
    %1149 = vmatpush1.bf16.msra.mxu0 0
    %1150 = vmatprep.subr.bf16.mxu0 0
    %1151 = vmatpush1.bf16.msra.mxu0 0
    %1152 = vmatprep.subr.bf16.mxu0 0
    %1153 = vmatpush1.bf16.msra.mxu0 0
    %1154 = vmatprep.subr.bf16.mxu0 0
    %1155 = vmatpush1.bf16.msra.mxu0 0
    %1156 = vmatprep.subr.bf16.mxu0 0
    %1157 = vmatpush1.bf16.msra.mxu0 0
    %1158 = vmatprep.subr.bf16.mxu0 0
    %1159 = vmatpush1.bf16.msra.mxu0 0
    %1160 = vmatprep.subr.bf16.mxu0 0
    %1161 = vmatpush1.bf16.msra.mxu0 0
    %1162 = vmatprep.subr.bf16.mxu0 0
    %1163 = vmatpush1.bf16.msra.mxu0 0
    %1164 = vmatprep.subr.bf16.mxu0 0
    %1165 = vmatpush1.bf16.msra.mxu0 0
    %1166 = vmatprep.subr.bf16.mxu0 0
    %1167 = vmatpush1.bf16.msra.mxu0 0
    %1168 = vmatprep.subr.bf16.mxu0 0
    %1169 = vmatpush1.bf16.msra.mxu0 0
    %1170 = vmatprep.subr.bf16.mxu0 0
    %1171 = vmatpush1.bf16.msra.mxu0 0
    %1172 = vmatprep.mubr.bf16.mxu0 0
    %1173 = vmatmul.mubr.bf16.gmra.mrb[0].mxu0 %v1138
    %v1174 = vpop.f32.mrb[0].mxu0
    %v1175 = vadd.f32 0.0, %v1174
    %v1176 = vpop.f32.mrb[0].mxu0
    %v1177 = vadd.f32 0.0, %v1176
    %v1178 = vpop.f32.mrb[0].mxu0
    %v1179 = vadd.f32 0.0, %v1178
    %v1180 = vpop.f32.mrb[0].mxu0
    %v1181 = vadd.f32 0.0, %v1180
    %1182 = vdwg.mxu0
    %1183 = vmatprep.subr.bf16.mxu0 %v1108
    %1184 = vmatpush1.bf16.msra.mxu0 %v1107
    %1185 = vmatprep.subr.bf16.mxu0 %v1112
    %1186 = vmatpush1.bf16.msra.mxu0 %v1111
    %1187 = vmatprep.subr.bf16.mxu0 %v1116
    %1188 = vmatpush1.bf16.msra.mxu0 %v1115
    %1189 = vmatprep.subr.bf16.mxu0 %v1120
    %1190 = vmatpush1.bf16.msra.mxu0 %v1119
    %1191 = vmatprep.subr.bf16.mxu0 0
    %1192 = vmatpush1.bf16.msra.mxu0 0
    %1193 = vmatprep.subr.bf16.mxu0 0
    %1194 = vmatpush1.bf16.msra.mxu0 0
    %1195 = vmatprep.subr.bf16.mxu0 0
    %1196 = vmatpush1.bf16.msra.mxu0 0
    %1197 = vmatprep.subr.bf16.mxu0 0
    %1198 = vmatpush1.bf16.msra.mxu0 0
    %1199 = vmatprep.subr.bf16.mxu0 0
    %1200 = vmatpush1.bf16.msra.mxu0 0
    %1201 = vmatprep.subr.bf16.mxu0 0
    %1202 = vmatpush1.bf16.msra.mxu0 0
    %1203 = vmatprep.subr.bf16.mxu0 0
    %1204 = vmatpush1.bf16.msra.mxu0 0
    %1205 = vmatprep.subr.bf16.mxu0 0
    %1206 = vmatpush1.bf16.msra.mxu0 0
    %1207 = vmatprep.subr.bf16.mxu0 0
    %1208 = vmatpush1.bf16.msra.mxu0 0
    %1209 = vmatprep.subr.bf16.mxu0 0
    %1210 = vmatpush1.bf16.msra.mxu0 0
    %1211 = vmatprep.subr.bf16.mxu0 0
    %1212 = vmatpush1.bf16.msra.mxu0 0
    %1213 = vmatprep.subr.bf16.mxu0 0
    %1214 = vmatpush1.bf16.msra.mxu0 0
    %1215 = vmatprep.mubr.bf16.mxu0 0
    %1216 = vmatmul.mubr.bf16.gmra.mrb[0].mxu0 %v1138
    %v1217 = vpop.f32.mrb[0].mxu0
    %v1218 = vadd.f32 0.0, %v1217
    %v1219 = vpop.f32.mrb[0].mxu0
    %v1220 = vadd.f32 0.0, %v1219
    %v1221 = vpop.f32.mrb[0].mxu0
    %v1222 = vadd.f32 0.0, %v1221
    %v1223 = vpop.f32.mrb[0].mxu0
    %v1224 = vadd.f32 0.0, %v1223
    %1225 = vdwg.mxu0
    %v1226 = vxor.u32 %v1218, 2147483648
    %v1227 = vxor.u32 %v1220, 2147483648
    %v1228 = vxor.u32 %v1222, 2147483648
    %v1229 = vxor.u32 %v1224, 2147483648
    %v1230 = vmul.f32 %v1226, 1.442695
    %v1231 = vpow.pop %v1230
    %v1232 = vmul.f32 %v1227, 1.442695
    %v1233 = vpow.pop %v1232
    %v1234 = vmul.f32 %v1228, 1.442695
    %v1235 = vpow.pop %v1234
    %v1236 = vmul.f32 %v1229, 1.442695
    %v1237 = vpow.pop %v1236
    %v1238 = vadd.f32 %v1231, 1.0
    %v1239 = vadd.f32 %v1233, 1.0
    %v1240 = vadd.f32 %v1235, 1.0
    %v1241 = vadd.f32 %v1237, 1.0
    %v1242 = vrcp.pop %v1238
    %v1243 = vmul.f32 1.0, %v1242
    %v1244 = vrcp.pop %v1239
    %v1245 = vmul.f32 1.0, %v1244
    %v1246 = vrcp.pop %v1240
    %v1247 = vmul.f32 1.0, %v1246
    %v1248 = vrcp.pop %v1241
    %v1249 = vmul.f32 1.0, %v1248
    %v1250 = vmul.f32 %v1218, %v1243
    %v1251 = vmul.f32 %v1220, %v1245
    %v1252 = vmul.f32 %v1222, %v1247
    %v1253 = vmul.f32 %v1224, %v1249
    %v1254 = vmul.f32 %v1175, %v1250
    %v1255 = vmul.f32 %v1177, %v1251
    %v1256 = vmul.f32 %v1179, %v1252
    %v1257 = vmul.f32 %v1181, %v1253
    %v1258 = vpack.c.bf16 %v1256, %v1254
    %v1259 = vpack.c.bf16 %v1257, %v1255
    %v1260 = vld [vmem:[%s6] sm:$0xf]
    %v1261 = vld [vmem:[%s6 + $0x4] sm:$0xf]
    %v1262 = vld [vmem:[%s6 + $0x8] sm:$0xf]
    %v1263 = vld [vmem:[%s6 + $0xc] sm:$0xf]
    %v1264 = vld [vmem:[%s6 + $0x10] sm:$0xf]
    %v1265 = vld [vmem:[%s6 + $0x14] sm:$0xf]
    %v1266 = vld [vmem:[%s6 + $0x18] sm:$0xf]
    %v1267 = vld [vmem:[%s6 + $0x1c] sm:$0xf]
    %v1268 = vld [vmem:[%s6 + $0x20] sm:$0xf]
    %v1269 = vld [vmem:[%s6 + $0x24] sm:$0xf]
    %v1270 = vld [vmem:[%s6 + $0x28] sm:$0xf]
    %v1271 = vld [vmem:[%s6 + $0x2c] sm:$0xf]
    %v1272 = vld [vmem:[%s6 + $0x30] sm:$0xf]
    %v1273 = vld [vmem:[%s6 + $0x34] sm:$0xf]
    %v1274 = vld [vmem:[%s6 + $0x38] sm:$0xf]
    %v1275 = vld [vmem:[%s6 + $0x3c] sm:$0xf]
    %v1276 = vld [vmem:[%s6 + $0x40] sm:$0xf]
    %v1277 = vld [vmem:[%s6 + $0x44] sm:$0xf]
    %v1278 = vld [vmem:[%s6 + $0x48] sm:$0xf]
    %v1279 = vld [vmem:[%s6 + $0x4c] sm:$0xf]
    %v1280 = vld [vmem:[%s6 + $0x50] sm:$0xf]
    %v1281 = vld [vmem:[%s6 + $0x54] sm:$0xf]
    %v1282 = vld [vmem:[%s6 + $0x58] sm:$0xf]
    %v1283 = vld [vmem:[%s6 + $0x5c] sm:$0xf]
    %v1284 = vld [vmem:[%s6 + $0x60] sm:$0xf]
    %v1285 = vld [vmem:[%s6 + $0x64] sm:$0xf]
    %v1286 = vld [vmem:[%s6 + $0x68] sm:$0xf]
    %v1287 = vld [vmem:[%s6 + $0x6c] sm:$0xf]
    %v1288 = vld [vmem:[%s6 + $0x70] sm:$0xf]
    %v1289 = vld [vmem:[%s6 + $0x74] sm:$0xf]
    %v1290 = vld [vmem:[%s6 + $0x78] sm:$0xf]
    %v1291 = vld [vmem:[%s6 + $0x7c] sm:$0xf]
    %v1324 = vunpack.c.l.b16 %v1260
    %v1325 = vunpack.c.l.b16 %v1261
    %v1326 = vunpack.c.l.b16 %v1262
    %v1327 = vunpack.c.l.b16 %v1263
    %v1328 = vunpack.c.l.b16 %v1264
    %v1329 = vunpack.c.l.b16 %v1265
    %v1330 = vunpack.c.l.b16 %v1266
    %v1331 = vunpack.c.l.b16 %v1267
    %v1332 = vunpack.c.l.b16 %v1268
    %v1333 = vunpack.c.l.b16 %v1269
    %v1334 = vunpack.c.l.b16 %v1270
    %v1335 = vunpack.c.l.b16 %v1271
    %v1336 = vunpack.c.l.b16 %v1272
    %v1337 = vunpack.c.l.b16 %v1273
    %v1338 = vunpack.c.l.b16 %v1274
    %v1339 = vunpack.c.l.b16 %v1275
    %v1340 = vunpack.c.l.b16 %v1276
    %v1341 = vunpack.c.l.b16 %v1277
    %v1342 = vunpack.c.l.b16 %v1278
    %v1343 = vunpack.c.l.b16 %v1279
    %v1344 = vunpack.c.l.b16 %v1280
    %v1345 = vunpack.c.l.b16 %v1281
    %v1346 = vunpack.c.l.b16 %v1282
    %v1347 = vunpack.c.l.b16 %v1283
    %v1348 = vunpack.c.l.b16 %v1284
    %v1349 = vunpack.c.l.b16 %v1285
    %v1350 = vunpack.c.l.b16 %v1286
    %v1351 = vunpack.c.l.b16 %v1287
    %v1352 = vunpack.c.l.b16 %v1288
    %v1353 = vunpack.c.l.b16 %v1289
    %v1354 = vunpack.c.l.b16 %v1290
    %v1355 = vunpack.c.l.b16 %v1291
    %v1356 = vpack.c.b16 %v1325, %v1324
    %v1357 = vpack.c.b16 %v1327, %v1326
    %v1358 = vpack.c.b16 %v1329, %v1328
    %v1359 = vpack.c.b16 %v1331, %v1330
    %v1360 = vpack.c.b16 %v1333, %v1332
    %v1361 = vpack.c.b16 %v1335, %v1334
    %v1362 = vpack.c.b16 %v1337, %v1336
    %v1363 = vpack.c.b16 %v1339, %v1338
    %v1364 = vpack.c.b16 %v1341, %v1340
    %v1365 = vpack.c.b16 %v1343, %v1342
    %v1366 = vpack.c.b16 %v1345, %v1344
    %v1367 = vpack.c.b16 %v1347, %v1346
    %v1368 = vpack.c.b16 %v1349, %v1348
    %v1369 = vpack.c.b16 %v1351, %v1350
    %v1370 = vpack.c.b16 %v1353, %v1352
    %v1371 = vpack.c.b16 %v1355, %v1354
    %1388 = vmatprep.subr.bf16.mxu0 0
    %1389 = vmatpush1.bf16.msra.mxu0 %v1356
    %1390 = vmatprep.subr.bf16.mxu0 0
    %1391 = vmatpush1.bf16.msra.mxu0 %v1357
    %1392 = vmatprep.subr.bf16.mxu0 0
    %1393 = vmatpush1.bf16.msra.mxu0 %v1358
    %1394 = vmatprep.subr.bf16.mxu0 0
    %1395 = vmatpush1.bf16.msra.mxu0 %v1359
    %1396 = vmatprep.subr.bf16.mxu0 0
    %1397 = vmatpush1.bf16.msra.mxu0 %v1360
    %1398 = vmatprep.subr.bf16.mxu0 0
    %1399 = vmatpush1.bf16.msra.mxu0 %v1361
    %1400 = vmatprep.subr.bf16.mxu0 0
    %1401 = vmatpush1.bf16.msra.mxu0 %v1362
    %1402 = vmatprep.subr.bf16.mxu0 0
    %1403 = vmatpush1.bf16.msra.mxu0 %v1363
    %1404 = vmatprep.subr.bf16.mxu0 0
    %1405 = vmatpush1.bf16.msra.mxu0 %v1364
    %1406 = vmatprep.subr.bf16.mxu0 0
    %1407 = vmatpush1.bf16.msra.mxu0 %v1365
    %1408 = vmatprep.subr.bf16.mxu0 0
    %1409 = vmatpush1.bf16.msra.mxu0 %v1366
    %1410 = vmatprep.subr.bf16.mxu0 0
    %1411 = vmatpush1.bf16.msra.mxu0 %v1367
    %1412 = vmatprep.subr.bf16.mxu0 0
    %1413 = vmatpush1.bf16.msra.mxu0 %v1368
    %1414 = vmatprep.subr.bf16.mxu0 0
    %1415 = vmatpush1.bf16.msra.mxu0 %v1369
    %1416 = vmatprep.subr.bf16.mxu0 0
    %1417 = vmatpush1.bf16.msra.mxu0 %v1370
    %1418 = vmatprep.subr.bf16.mxu0 0
    %1419 = vmatpush1.bf16.msra.mxu0 %v1371
    %1420 = vmatprep.mubr.bf16.mxu0 %v1259
    %1421 = vmatmul.mubr.bf16.gmra.mrb[0].mxu0 %v1258
    %v1422 = vpop.f32.mrb[0].mxu0
    %v1423 = vadd.f32 0.0, %v1422
    %v1424 = vpop.f32.mrb[0].mxu0
    %v1425 = vpop.f32.mrb[0].mxu0
    %v1426 = vadd.f32 0.0, %v1425
    %v1427 = vpop.f32.mrb[0].mxu0
    %1428 = vdwg.mxu0
    %v1429 = vld [vmem:[#allocation7] sm:$0x1]
    %v1430 = vmul.f32 %v1423, %v1423
    %v1431 = vmul.f32 %v1426, %v1426
    %v1432 = vsel %vm160, %v1430, 0.0
    %1433 = vadd.xlane.f32.xlu0 %v1432
    %v1434 = vpop.xlane.xlu0 %1433
    %v1435 = vsel %vm160, %v1431, 0.0
    %1436 = vadd.xlane.f32.xlu0 %v1435
    %v1437 = vpop.xlane.xlu0 %1436
    %v1438 = vmax.f32 %v1434, 1e-12
    %v1439 = vmax.f32 %v1437, 1e-12
    %v1440 = vrsqrt.pop %v1438
    %v1441 = vrsqrt.pop %v1439
    %v1442 = vmul.f32 %v1423, %v1440
    %v1443 = vmul.f32 %v1426, %v1441
    %v1444 = vsub.f32 %v1442, %v1038
    %v1445 = vsub.f32 %v1443, %v1039
    %v1447 = vlaneseq
    %v1448 = vshrl.u32 %v1447, 7
    %v1449 = vsub.s32 0, %v1448
    %v1450 = vrot.slane %v1429, %v1449
    %v1452 = vmul.f32 %v1450, %v1444
    %v1453 = vmul.f32 %v1450, %v1445
    %v1454 = vadd.f32 %v1038, %v1452
    %v1455 = vadd.f32 %v1039, %v1453
    %v1456 = vmul.f32 %v1454, %v1454
    %v1457 = vmul.f32 %v1455, %v1455
    %v1458 = vsel %vm160, %v1456, 0.0
    %1459 = vadd.xlane.f32.xlu0 %v1458
    %v1460 = vpop.xlane.xlu0 %1459
    %v1461 = vsel %vm160, %v1457, 0.0
    %1462 = vadd.xlane.f32.xlu0 %v1461
    %v1463 = vpop.xlane.xlu0 %1462
    %v1464 = vmax.f32 %v1460, 1e-12
    %v1465 = vmax.f32 %v1463, 1e-12
    %v1466 = vrsqrt.pop %v1464
    %v1467 = vrsqrt.pop %v1465
    %v1468 = vmul.f32 %v1454, %v1466
    %v1469 = vmul.f32 %v1455, %v1467
    %1470 = vst.msk [vmem:[#allocation8] sm:$0xff] %vm160, %v1468
    %1471 = vst.msk [vmem:[#allocation8 + $0x8] sm:$0xff] %vm160, %v1469
    // Predicated region
    $region58: #{tpu_custom_call.1} parent=1 // pred_check
      _
    $region59: #{tpu_custom_call.1} parent=1 // pred_check_branch
      %1473 = sbr.rel (0) target = $region61
    $region60: #{tpu_custom_call.1} parent=1 // pred_region
      %s1475 = ssub.s32 256, 256
      %1476 = vsyncadd [#allocation4], %s1475
      %s1477 = sshll.u32 [#allocation8], 4
      %s1478 = int_to_ptr.vmem [resolvable:$true] %s1477
      %1483 = dma.vmem_to_hbm [thread:$0]  %s1478, 256, %s11, [#allocation4], 128, 128, 8
    $region61: #{tpu_custom_call.1} parent=1 // pred_fallthru
      _
    // Predicated region
    $region62: #{tpu_custom_call.1} parent=1 // pred_check
      _
    $region63: #{tpu_custom_call.1} parent=1 // pred_check_branch
      %1485 = sbr.rel (0) target = $region65
    $region64: #{tpu_custom_call.1} parent=1 // pred_region
      %1486 = dma.done [#allocation4], 256
    $region65: #{tpu_custom_call.1} parent=1 // pred_fallthru
      _
    %1487 = vsyncpa [#allocation3], 1
    %1488 = vsyncpa [#allocation6], 1
    %1489 = vsyncpa [#allocation4], 1

</llo_original>
